<compile_context>
chip_gen: v7x
topology: tpu7x:2x2x1
jax: 0.10.0
libtpu: 0.0.40
codegen_flags: <defaults>
</compile_context>

<pallas_src>
import jax
import jax.numpy as jnp
from jax import lax
from jax.experimental import pallas as pl
from jax.experimental.pallas import tpu as pltpu

# --- small config (consistent with the module's forward) ---
BATCH = 2
SEQ = 8
HIDDEN = 32
NUM_HEADS = 4
HEAD_DIM = HIDDEN // NUM_HEADS
INNER = 4 * HIDDEN                  # config.n_inner default: 4 * hidden_size
SCALE_ATTN_WEIGHTS = True
MASKED_BIAS = -10000.0              # module registers masked_bias = -10000.0
LN_EPS = 1e-5                       # config.layer_norm_epsilon

GROUPS = BATCH * NUM_HEADS          # one "group" = one (batch, head) attention block
ROWS = GROUPS * SEQ                 # stacked attention rows = 64
PARAM_COLS = 128                    # packed small-parameter block lane width

assert SEQ & (SEQ - 1) == 0, "SEQ must be a power of two (shift-based mask build)"
assert HIDDEN <= PARAM_COLS and INNER <= PARAM_COLS


def _erf_poly(z):
    # Abramowitz & Stegun 7.1.26, |error| <= 1.5e-7 — matches exact erf-GELU (F.gelu
    # default) without relying on a lax.erf lowering in Mosaic.
    az = jnp.where(z >= 0.0, z, -z)
    t = 1.0 / (1.0 + 0.3275911 * az)
    poly = t * (0.254829592 + t * (-0.284496736 +
                t * (1.421413741 + t * (-1.453152027 + t * 1.061405429))))
    y = 1.0 - poly * jnp.exp(-az * az)
    return jnp.where(z >= 0.0, y, -y)


def _gelu_erf(x):
    return 0.5 * x * (1.0 + _erf_poly(x * 0.7071067811865476))


def _layer_norm(x, w, b):
    mu = jnp.mean(x, axis=-1, keepdims=True)
    var = jnp.mean((x - mu) ** 2, axis=-1, keepdims=True)
    return (x - mu) * lax.rsqrt(var + LN_EPS) * w + b


def _tfmr_block_kernel(x_ref, wqkv_ref, bqkv_ref, wproj_ref, wfc_ref, wmp_ref,
                       prm_ref, hid_ref, attnw_ref):
    H, NH, HD, S, B = HIDDEN, NUM_HEADS, HEAD_DIM, SEQ, BATCH

    x = x_ref[...]                                   # (B*S, H) token slab
    prm = prm_ref[...]                               # (8, 128) packed small params
    ln1_w, ln1_b = prm[0:1, :H], prm[1:2, :H]
    ln2_w, ln2_b = prm[2:3, :H], prm[3:4, :H]
    proj_b, mlp_b = prm[4:5, :H], prm[5:6, :H]
    fc_b = prm[6:7, :INNER]

    # ---- ln_1 ----
    h1 = _layer_norm(x, ln1_w, ln1_b)                # (B*S, H)

    # ---- fused c_attn + head stacking via ONE block-diagonal matmul ----
    # X row (b*NH + h)*S + s holds h1[b*S + s] at lane offset h*H, zeros elsewhere,
    # so X @ W_stack (per-head weights stacked along the contraction dim) directly
    # yields head-stacked Q|K|V with no per-head matmuls and no head transpose.
    blocks = []
    for bi in range(B):
        h1_b = h1[bi * S:(bi + 1) * S, :]            # sublane slice, cheap view
        for hi in range(NH):
            parts = []
            if hi > 0:
                parts.append(jnp.zeros((S, hi * H), jnp.float32))
            parts.append(h1_b)
            if hi < NH - 1:
                parts.append(jnp.zeros((S, (NH - 1 - hi) * H), jnp.float32))
            blocks.append(parts[0] if len(parts) == 1
                          else jnp.concatenate(parts, axis=1))
    x_blk = jnp.concatenate(blocks, axis=0)          # (ROWS, NH*H) = (64, 128)

    qkv = jnp.dot(x_blk, wqkv_ref[...],
                  preferred_element_type=jnp.float32) + bqkv_ref[...]   # (64, 24)
    q = qkv[:, 0:HD]                                 # (64, 8), 1/sqrt(hd) pre-folded
    k = qkv[:, HD:2 * HD]                            # (64, 8)
    v = qkv[:, 2 * HD:3 * HD]                        # (64, 8)

    # ---- one block-diagonal causal masked softmax over all (b, h) at once ----
    r_idx = lax.broadcasted_iota(jnp.int32, (ROWS, ROWS), 0)
    c_idx = lax.broadcasted_iota(jnp.int32, (ROWS, ROWS), 1)
    log2s = SEQ.bit_length() - 1
    # same (batch, head) block AND causal; blocks are SEQ-aligned so r>=c suffices.
    mask = ((r_idx >> log2s) == (c_idx >> log2s)) & (r_idx >= c_idx)

    scores = lax.dot_general(q, k, (((1,), (1,)), ((), ())),
                             preferred_element_type=jnp.float32)        # (64, 64)
    scores = jnp.where(mask, scores, MASKED_BIAS)
    m = jnp.max(scores, axis=-1, keepdims=True)
    e = jnp.exp(scores - m)
    # Exact normalization (review: approx reciprocal not worth the tolerance hit).
    p = e / jnp.sum(e, axis=-1, keepdims=True)       # (64, 64); off-block entries == 0
    # TODO(synk): attn_dropout / resid_dropout / mlp dropout are identity (eval mode).

    o = jnp.dot(p, v, preferred_element_type=jnp.float32)               # (64, 8)

    # ---- merge_heads once + single c_proj matmul ----
    merged = jnp.concatenate(
        [jnp.concatenate([o[(bi * NH + hi) * S:(bi * NH + hi + 1) * S, :]
                          for hi in range(NH)], axis=1)
         for bi in range(B)], axis=0)                # (B*S, H) = (16, 32)
    attn_out = jnp.dot(merged, wproj_ref[...],
                       preferred_element_type=jnp.float32) + proj_b
    h2 = x + attn_out                                # residual 1

    # ---- ln_2 + MLP ----
    h3 = _layer_norm(h2, ln2_w, ln2_b)
    fc = jnp.dot(h3, wfc_ref[...], preferred_element_type=jnp.float32) + fc_b
    mlp = jnp.dot(_gelu_erf(fc), wmp_ref[...],
                  preferred_element_type=jnp.float32) + mlp_b
    hid = h2 + mlp                                   # residual 2

    # ---- natural single stores (no lane-concat output packing) ----
    hid_ref[...] = hid                               # (B*S, H)    = (16, 32)
    attnw_ref[...] = p                               # (ROWS, ROWS) = (64, 64)


def _whole_spec(shape):
    zeros = (0,) * len(shape)
    return pl.BlockSpec(tuple(shape), lambda i, z=zeros: z)


def prepare_tfmr_block_params(ln1_w, ln1_b, w_attn, b_attn, w_proj, b_proj,
                              ln2_w, ln2_b, w_fc, b_fc, w_mp, b_mp):
    """One-time weight repacking (hoisted out of the forward path, per review).

    Folds the 1/sqrt(head_dim) attention scale into the Q weights/bias and builds
    the block-stacked QKV weight, the per-row QKV bias slab and the packed small-
    parameter block consumed by the kernel."""
    H, NH, HD, S, B = HIDDEN, NUM_HEADS, HEAD_DIM, SEQ, BATCH
    scale = 1.0 / float(HD) ** 0.5 if SCALE_ATTN_WEIGHTS else 1.0

    wq, wk, wv = w_attn[:, :H], w_attn[:, H:2 * H], w_attn[:, 2 * H:]
    bq, bk, bv = b_attn[:H], b_attn[H:2 * H], b_attn[2 * H:]

    def per_head(w):                                  # (H, H) -> (NH, H, HD)
        return w.reshape(H, NH, HD).transpose(1, 0, 2)

    # Rows h*H + c of wqkv_stack hold [Wq_h | Wk_h | Wv_h][c, :] -> matches the
    # lane offset h*H of the block-diagonal input built in the kernel.
    wqkv_stack = jnp.concatenate(
        [per_head(wq) * scale, per_head(wk), per_head(wv)], axis=-1
    ).reshape(NH * H, 3 * HD)                         # (128, 24)

    bias_head = jnp.concatenate(
        [bq.reshape(NH, HD) * scale, bk.reshape(NH, HD), bv.reshape(NH, HD)],
        axis=-1)                                      # (NH, 24)
    # Row (b*NH + h)*S + s gets head h's bias.
    qkv_bias = jnp.tile(jnp.repeat(bias_head, S, axis=0), (B, 1))   # (64, 24)

    pb = jnp.zeros((8, PARAM_COLS), jnp.float32)
    pb = pb.at[0, :H].set(ln1_w).at[1, :H].set(ln1_b)
    pb = pb.at[2, :H].set(ln2_w).at[3, :H].set(ln2_b)
    pb = pb.at[4, :H].set(b_proj).at[5, :H].set(b_mp)
    pb = pb.at[6, :INNER].set(b_fc)

    return (wqkv_stack, qkv_bias, w_proj, w_fc, w_mp, pb)


def tfmr_block_forward(hidden_states, prepared):
    """Full TfmrBlock forward (layer_past=None, use_cache=False).

    Returns (hidden_states_out, attn_weights) like the PyTorch module."""
    wqkv_stack, qkv_bias, w_proj, w_fc, w_mp, param_block = prepared
    B, S, H = hidden_states.shape
    x2 = hidden_states.reshape(B * S, H)

    inputs = (x2, wqkv_stack, qkv_bias, w_proj, w_fc, w_mp, param_block)

    out_shape = (jax.ShapeDtypeStruct((B * S, H), jnp.float32),       # hidden slab
                 jax.ShapeDtypeStruct((ROWS, ROWS), jnp.float32))     # block-diag probs

    grid_spec = pltpu.PrefetchScalarGridSpec(
        num_scalar_prefetch=0,
        grid=(1,),                                    # single step: whole batch at once
        in_specs=[_whole_spec(a.shape) for a in inputs],
        out_specs=[_whole_spec(s.shape) for s in out_shape])

    hid, p_full = pl.pallas_call(
        _tfmr_block_kernel,
        out_shape=out_shape,
        grid_spec=grid_spec,
        compiler_params=pltpu.CompilerParams(dimension_semantics=("arbitrary",)),
        cost_estimate=pl.CostEstimate(flops=820_000, transcendentals=6_500,
                                      bytes_accessed=80_000),
    )(*inputs)

    hidden_out = hid.reshape(B, S, H)
    # Extract the diagonal (S, S) blocks of the block-diagonal probability slab.
    full = p_full.reshape(GROUPS, S, GROUPS, S)
    idx = jnp.arange(GROUPS)
    attn_weights = full[idx, :, idx, :].reshape(B, NUM_HEADS, S, S)
    return hidden_out, attn_weights


def _reference_block(x, ln1_w, ln1_b, w_attn, b_attn, w_proj, b_proj,
                     ln2_w, ln2_b, w_fc, b_fc, w_mp, b_mp):
    """Pure-JAX reference mirroring the PyTorch TfmrBlock (eval mode)."""
    B, S, H = x.shape
    h1 = _layer_norm(x, ln1_w, ln1_b)
    qkv = jnp.einsum("bsh,hf->bsf", h1, w_attn) + b_attn
    q, k, v = jnp.split(qkv, 3, axis=-1)

    def split_heads(t):
        return t.reshape(B, S, NUM_HEADS, HEAD_DIM).transpose(0, 2, 1, 3)

    q, k, v = split_heads(q), split_heads(k), split_heads(v)
    scores = jnp.einsum("bhqd,bhkd->bhqk", q, k)
    if SCALE_ATTN_WEIGHTS:
        scores = scores / float(HEAD_DIM) ** 0.5
    causal = jnp.tril(jnp.ones((S, S), dtype=bool))[None, None]
    scores = jnp.where(causal, scores, MASKED_BIAS)
    w = jax.nn.softmax(scores, axis=-1)
    attn = jnp.einsum("bhqk,bhkd->bhqd", w, v).transpose(0, 2, 1, 3).reshape(B, S, H)
    attn = jnp.einsum("bsh,hf->bsf", attn, w_proj) + b_proj
    h2 = x + attn
    h3 = _layer_norm(h2, ln2_w, ln2_b)
    fc = jnp.einsum("bsh,hf->bsf", h3, w_fc) + b_fc
    mlp = jnp.einsum("bsf,fh->bsh", jax.nn.gelu(fc, approximate=False), w_mp) + b_mp
    return h2 + mlp, w


if __name__ == "__main__":
    key = jax.random.PRNGKey(0)
    ks = jax.random.split(key, 13)

    hidden_states = jax.random.normal(ks[0], (BATCH, SEQ, HIDDEN), dtype=jnp.float32)

    # Deterministic parameter init (TransposeLinear: normal std=0.02; small biases to
    # exercise every add path; LayerNorm near-default weights).
    w_attn = 0.02 * jax.random.normal(ks[1], (HIDDEN, 3 * HIDDEN), dtype=jnp.float32)
    b_attn = 0.01 * jax.random.normal(ks[2], (3 * HIDDEN,), dtype=jnp.float32)
    w_proj = 0.02 * jax.random.normal(ks[3], (HIDDEN, HIDDEN), dtype=jnp.float32)
    b_proj = 0.01 * jax.random.normal(ks[4], (HIDDEN,), dtype=jnp.float32)
    ln1_w = 1.0 + 0.01 * jax.random.normal(ks[5], (HIDDEN,), dtype=jnp.float32)
    ln1_b = 0.01 * jax.random.normal(ks[6], (HIDDEN,), dtype=jnp.float32)
    ln2_w = 1.0 + 0.01 * jax.random.normal(ks[7], (HIDDEN,), dtype=jnp.float32)
    ln2_b = 0.01 * jax.random.normal(ks[8], (HIDDEN,), dtype=jnp.float32)
    w_fc = 0.02 * jax.random.normal(ks[9], (HIDDEN, INNER), dtype=jnp.float32)
    b_fc = 0.01 * jax.random.normal(ks[10], (INNER,), dtype=jnp.float32)
    w_mp = 0.02 * jax.random.normal(ks[11], (INNER, HIDDEN), dtype=jnp.float32)
    b_mp = 0.01 * jax.random.normal(ks[12], (HIDDEN,), dtype=jnp.float32)

    # Weight repacking done ONCE (hoisted out of the forward path, per review).
    prepared = jax.tree_util.tree_map(
        jax.block_until_ready,
        prepare_tfmr_block_params(ln1_w, ln1_b, w_attn, b_attn, w_proj, b_proj,
                                  ln2_w, ln2_b, w_fc, b_fc, w_mp, b_mp))

    hid, attn_w = tfmr_block_forward(hidden_states, prepared)
    hid = jax.block_until_ready(hid)
    attn_w = jax.block_until_ready(attn_w)

    ref_hid, ref_w = _reference_block(hidden_states, ln1_w, ln1_b, w_attn, b_attn,
                                      w_proj, b_proj, ln2_w, ln2_b,
                                      w_fc, b_fc, w_mp, b_mp)

    assert hid.shape == (BATCH, SEQ, HIDDEN)
    assert attn_w.shape == (BATCH, NUM_HEADS, SEQ, SEQ)
    # Exact softmax normalization + erf-GELU: remaining delta is only Mosaic-vs-XLA
    # transcendental (exp / rsqrt) implementation differences.
    assert jnp.allclose(hid, ref_hid, atol=1e-3, rtol=1e-3)
    assert jnp.allclose(attn_w, ref_w, atol=1e-3, rtol=1e-3)

    print("KERNEL_OK")
</pallas_src>

<mosaic_0001>
module attributes {stable_mosaic.version = 11 : i64} {
  func.func @_tfmr_block_kernel(%arg0: i32, %arg1: memref<16x32xf32, #tpu.memory_space<vmem>>, %arg2: memref<128x24xf32, #tpu.memory_space<vmem>>, %arg3: memref<64x24xf32, #tpu.memory_space<vmem>>, %arg4: memref<32x32xf32, #tpu.memory_space<vmem>>, %arg5: memref<32x128xf32, #tpu.memory_space<vmem>>, %arg6: memref<128x32xf32, #tpu.memory_space<vmem>>, %arg7: memref<8x128xf32, #tpu.memory_space<vmem>>, %arg8: memref<16x32xf32, #tpu.memory_space<vmem>>, %arg9: memref<64x64xf32, #tpu.memory_space<vmem>>) attributes {dimension_semantics = [#tpu.dimension_semantics<arbitrary>], iteration_bounds = array<i64: 1>, scalar_prefetch = 0 : i64, scratch_operands = 0 : i64, tpu.core_type = #tpu.core_type<tc>, window_params = [{pipeline_mode = #tpu.pipeline_mode<synchronous>, transform_indices = @transform_0, window_bounds = array<i64: 16, 32>}, {pipeline_mode = #tpu.pipeline_mode<synchronous>, transform_indices = @transform_1, window_bounds = array<i64: 128, 24>}, {pipeline_mode = #tpu.pipeline_mode<synchronous>, transform_indices = @transform_2, window_bounds = array<i64: 64, 24>}, {pipeline_mode = #tpu.pipeline_mode<synchronous>, transform_indices = @transform_3, window_bounds = array<i64: 32, 32>}, {pipeline_mode = #tpu.pipeline_mode<synchronous>, transform_indices = @transform_4, window_bounds = array<i64: 32, 128>}, {pipeline_mode = #tpu.pipeline_mode<synchronous>, transform_indices = @transform_5, window_bounds = array<i64: 128, 32>}, {pipeline_mode = #tpu.pipeline_mode<synchronous>, transform_indices = @transform_6, window_bounds = array<i64: 8, 128>}, {pipeline_mode = #tpu.pipeline_mode<synchronous>, transform_indices = @transform_7, window_bounds = array<i64: 16, 32>}, {pipeline_mode = #tpu.pipeline_mode<synchronous>, transform_indices = @transform_8, window_bounds = array<i64: 64, 64>}]} {
    %c0 = arith.constant 0 : index
    %c0_0 = arith.constant 0 : index
    %0 = vector.load %arg1[%c0, %c0_0] : memref<16x32xf32, #tpu.memory_space<vmem>>, vector<16x32xf32>
    %c0_1 = arith.constant 0 : index
    %c0_2 = arith.constant 0 : index
    %1 = vector.load %arg7[%c0_1, %c0_2] : memref<8x128xf32, #tpu.memory_space<vmem>>, vector<8x128xf32>
    %2 = vector.extract_strided_slice %1 {offsets = [0, 0], sizes = [1, 32], strides = [1, 1]} : vector<8x128xf32> to vector<1x32xf32>
    %3 = vector.extract_strided_slice %1 {offsets = [1, 0], sizes = [1, 32], strides = [1, 1]} : vector<8x128xf32> to vector<1x32xf32>
    %4 = vector.extract_strided_slice %1 {offsets = [2, 0], sizes = [1, 32], strides = [1, 1]} : vector<8x128xf32> to vector<1x32xf32>
    %5 = vector.extract_strided_slice %1 {offsets = [3, 0], sizes = [1, 32], strides = [1, 1]} : vector<8x128xf32> to vector<1x32xf32>
    %6 = vector.extract_strided_slice %1 {offsets = [4, 0], sizes = [1, 32], strides = [1, 1]} : vector<8x128xf32> to vector<1x32xf32>
    %7 = vector.extract_strided_slice %1 {offsets = [5, 0], sizes = [1, 32], strides = [1, 1]} : vector<8x128xf32> to vector<1x32xf32>
    %8 = vector.extract_strided_slice %1 {offsets = [6, 0], sizes = [1, 128], strides = [1, 1]} : vector<8x128xf32> to vector<1x128xf32>
    %cst = arith.constant dense<0.000000e+00> : vector<16xf32>
    %9 = vector.multi_reduction <add>, %0, %cst [1] : vector<16x32xf32> to vector<16xf32>
    %10 = vector.shape_cast %9 : vector<16xf32> to vector<16x1xf32>
    %cst_3 = arith.constant 3.200000e+01 : f32
    %11 = vector.broadcast %cst_3 : f32 to vector<16x1xf32>
    %12 = arith.divf %10, %11 : vector<16x1xf32>
    %13 = vector.broadcast %12 : vector<16x1xf32> to vector<16x32xf32>
    %14 = arith.subf %0, %13 : vector<16x32xf32>
    %15 = arith.mulf %14, %14 : vector<16x32xf32>
    %cst_4 = arith.constant dense<0.000000e+00> : vector<16xf32>
    %16 = vector.multi_reduction <add>, %15, %cst_4 [1] : vector<16x32xf32> to vector<16xf32>
    %17 = vector.shape_cast %16 : vector<16xf32> to vector<16x1xf32>
    %cst_5 = arith.constant 3.200000e+01 : f32
    %18 = vector.broadcast %cst_5 : f32 to vector<16x1xf32>
    %19 = arith.divf %17, %18 : vector<16x1xf32>
    %20 = vector.broadcast %12 : vector<16x1xf32> to vector<16x32xf32>
    %21 = arith.subf %0, %20 : vector<16x32xf32>
    %cst_6 = arith.constant 9.99999974E-6 : f32
    %22 = vector.broadcast %cst_6 : f32 to vector<16x1xf32>
    %23 = arith.addf %19, %22 : vector<16x1xf32>
    %24 = math.rsqrt %23 : vector<16x1xf32>
    %25 = vector.broadcast %24 : vector<16x1xf32> to vector<16x32xf32>
    %26 = arith.mulf %21, %25 : vector<16x32xf32>
    %27 = vector.broadcast %2 : vector<1x32xf32> to vector<16x32xf32>
    %28 = arith.mulf %26, %27 : vector<16x32xf32>
    %29 = vector.broadcast %3 : vector<1x32xf32> to vector<16x32xf32>
    %30 = arith.addf %28, %29 : vector<16x32xf32>
    %31 = vector.extract_strided_slice %30 {offsets = [0, 0], sizes = [8, 32], strides = [1, 1]} : vector<16x32xf32> to vector<8x32xf32>
    %cst_7 = arith.constant 0.000000e+00 : f32
    %32 = vector.broadcast %cst_7 : f32 to vector<8x96xf32>
    %33 = tpu.concatenate %31, %32 in 1 : vector<8x32xf32>, vector<8x96xf32> -> vector<8x128xf32>
    %cst_8 = arith.constant 0.000000e+00 : f32
    %34 = vector.broadcast %cst_8 : f32 to vector<8x32xf32>
    %cst_9 = arith.constant 0.000000e+00 : f32
    %35 = vector.broadcast %cst_9 : f32 to vector<8x64xf32>
    %36 = tpu.concatenate %34, %31, %35 in 1 : vector<8x32xf32>, vector<8x32xf32>, vector<8x64xf32> -> vector<8x128xf32>
    %cst_10 = arith.constant 0.000000e+00 : f32
    %37 = vector.broadcast %cst_10 : f32 to vector<8x64xf32>
    %cst_11 = arith.constant 0.000000e+00 : f32
    %38 = vector.broadcast %cst_11 : f32 to vector<8x32xf32>
    %39 = tpu.concatenate %37, %31, %38 in 1 : vector<8x64xf32>, vector<8x32xf32>, vector<8x32xf32> -> vector<8x128xf32>
    %cst_12 = arith.constant 0.000000e+00 : f32
    %40 = vector.broadcast %cst_12 : f32 to vector<8x96xf32>
    %41 = tpu.concatenate %40, %31 in 1 : vector<8x96xf32>, vector<8x32xf32> -> vector<8x128xf32>
    %42 = vector.extract_strided_slice %30 {offsets = [8, 0], sizes = [8, 32], strides = [1, 1]} : vector<16x32xf32> to vector<8x32xf32>
    %cst_13 = arith.constant 0.000000e+00 : f32
    %43 = vector.broadcast %cst_13 : f32 to vector<8x96xf32>
    %44 = tpu.concatenate %42, %43 in 1 : vector<8x32xf32>, vector<8x96xf32> -> vector<8x128xf32>
    %cst_14 = arith.constant 0.000000e+00 : f32
    %45 = vector.broadcast %cst_14 : f32 to vector<8x32xf32>
    %cst_15 = arith.constant 0.000000e+00 : f32
    %46 = vector.broadcast %cst_15 : f32 to vector<8x64xf32>
    %47 = tpu.concatenate %45, %42, %46 in 1 : vector<8x32xf32>, vector<8x32xf32>, vector<8x64xf32> -> vector<8x128xf32>
    %cst_16 = arith.constant 0.000000e+00 : f32
    %48 = vector.broadcast %cst_16 : f32 to vector<8x64xf32>
    %cst_17 = arith.constant 0.000000e+00 : f32
    %49 = vector.broadcast %cst_17 : f32 to vector<8x32xf32>
    %50 = tpu.concatenate %48, %42, %49 in 1 : vector<8x64xf32>, vector<8x32xf32>, vector<8x32xf32> -> vector<8x128xf32>
    %cst_18 = arith.constant 0.000000e+00 : f32
    %51 = vector.broadcast %cst_18 : f32 to vector<8x96xf32>
    %52 = tpu.concatenate %51, %42 in 1 : vector<8x96xf32>, vector<8x32xf32> -> vector<8x128xf32>
    %53 = tpu.concatenate %33, %36, %39, %41, %44, %47, %50, %52 in 0 : vector<8x128xf32>, vector<8x128xf32>, vector<8x128xf32>, vector<8x128xf32>, vector<8x128xf32>, vector<8x128xf32>, vector<8x128xf32>, vector<8x128xf32> -> vector<64x128xf32>
    %c0_19 = arith.constant 0 : index
    %c0_20 = arith.constant 0 : index
    %54 = vector.load %arg2[%c0_19, %c0_20] : memref<128x24xf32, #tpu.memory_space<vmem>>, vector<128x24xf32>
    %cst_21 = arith.constant dense<0.000000e+00> : vector<64x24xf32>
    %55 = tpu.matmul %53, %54, %cst_21 {dimension_numbers = #tpu.dot_dimension_numbers<[1], [0], [0], [1], [0, 0, 1, 1], [], []>} : vector<64x128xf32>, vector<128x24xf32>, vector<64x24xf32> -> vector<64x24xf32>
    %c0_22 = arith.constant 0 : index
    %c0_23 = arith.constant 0 : index
    %56 = vector.load %arg3[%c0_22, %c0_23] : memref<64x24xf32, #tpu.memory_space<vmem>>, vector<64x24xf32>
    %57 = arith.addf %55, %56 : vector<64x24xf32>
    %58 = vector.extract_strided_slice %57 {offsets = [0, 0], sizes = [64, 8], strides = [1, 1]} : vector<64x24xf32> to vector<64x8xf32>
    %59 = vector.extract_strided_slice %57 {offsets = [0, 8], sizes = [64, 8], strides = [1, 1]} : vector<64x24xf32> to vector<64x8xf32>
    %60 = vector.extract_strided_slice %57 {offsets = [0, 16], sizes = [64, 8], strides = [1, 1]} : vector<64x24xf32> to vector<64x8xf32>
    %61 = tpu.iota {dimensions = array<i32: 0>} : vector<64x64xi32>
    %62 = tpu.iota {dimensions = array<i32: 1>} : vector<64x64xi32>
    %c3_i32 = arith.constant 3 : i32
    %63 = vector.broadcast %c3_i32 : i32 to vector<64x64xi32>
    %64 = arith.shrsi %61, %63 : vector<64x64xi32>
    %c3_i32_24 = arith.constant 3 : i32
    %65 = vector.broadcast %c3_i32_24 : i32 to vector<64x64xi32>
    %66 = arith.shrsi %62, %65 : vector<64x64xi32>
    %67 = arith.cmpi eq, %64, %66 : vector<64x64xi32>
    %68 = arith.cmpi sge, %61, %62 : vector<64x64xi32>
    %69 = arith.andi %67, %68 : vector<64x64xi1>
    %cst_25 = arith.constant dense<0.000000e+00> : vector<64x64xf32>
    %70 = tpu.matmul %58, %59, %cst_25 {dimension_numbers = #tpu.dot_dimension_numbers<[1], [1], [0], [0], [0, 0, 1, 0], [], []>} : vector<64x8xf32>, vector<64x8xf32>, vector<64x64xf32> -> vector<64x64xf32>
    %cst_26 = arith.constant -1.000000e+04 : f32
    %71 = vector.broadcast %cst_26 : f32 to vector<64x64xf32>
    %72 = arith.select %69, %70, %71 : vector<64x64xi1>, vector<64x64xf32>
    %cst_27 = arith.constant dense<0xFF800000> : vector<64xf32>
    %73 = vector.multi_reduction <maximumf>, %72, %cst_27 [1] : vector<64x64xf32> to vector<64xf32>
    %74 = vector.shape_cast %73 : vector<64xf32> to vector<64x1xf32>
    %75 = vector.broadcast %74 : vector<64x1xf32> to vector<64x64xf32>
    %76 = arith.subf %72, %75 : vector<64x64xf32>
    %77 = math.exp %76 : vector<64x64xf32>
    %cst_28 = arith.constant dense<0.000000e+00> : vector<64xf32>
    %78 = vector.multi_reduction <add>, %77, %cst_28 [1] : vector<64x64xf32> to vector<64xf32>
    %79 = vector.shape_cast %78 : vector<64xf32> to vector<64x1xf32>
    %80 = vector.broadcast %79 : vector<64x1xf32> to vector<64x64xf32>
    %81 = arith.divf %77, %80 : vector<64x64xf32>
    %cst_29 = arith.constant dense<0.000000e+00> : vector<64x8xf32>
    %82 = tpu.matmul %81, %60, %cst_29 {dimension_numbers = #tpu.dot_dimension_numbers<[1], [0], [0], [1], [0, 0, 1, 1], [], []>} : vector<64x64xf32>, vector<64x8xf32>, vector<64x8xf32> -> vector<64x8xf32>
    %83 = vector.extract_strided_slice %82 {offsets = [0, 0], sizes = [8, 8], strides = [1, 1]} : vector<64x8xf32> to vector<8x8xf32>
    %84 = vector.extract_strided_slice %82 {offsets = [8, 0], sizes = [8, 8], strides = [1, 1]} : vector<64x8xf32> to vector<8x8xf32>
    %85 = vector.extract_strided_slice %82 {offsets = [16, 0], sizes = [8, 8], strides = [1, 1]} : vector<64x8xf32> to vector<8x8xf32>
    %86 = vector.extract_strided_slice %82 {offsets = [24, 0], sizes = [8, 8], strides = [1, 1]} : vector<64x8xf32> to vector<8x8xf32>
    %87 = tpu.concatenate %83, %84, %85, %86 in 1 : vector<8x8xf32>, vector<8x8xf32>, vector<8x8xf32>, vector<8x8xf32> -> vector<8x32xf32>
    %88 = vector.extract_strided_slice %82 {offsets = [32, 0], sizes = [8, 8], strides = [1, 1]} : vector<64x8xf32> to vector<8x8xf32>
    %89 = vector.extract_strided_slice %82 {offsets = [40, 0], sizes = [8, 8], strides = [1, 1]} : vector<64x8xf32> to vector<8x8xf32>
    %90 = vector.extract_strided_slice %82 {offsets = [48, 0], sizes = [8, 8], strides = [1, 1]} : vector<64x8xf32> to vector<8x8xf32>
    %91 = vector.extract_strided_slice %82 {offsets = [56, 0], sizes = [8, 8], strides = [1, 1]} : vector<64x8xf32> to vector<8x8xf32>
    %92 = tpu.concatenate %88, %89, %90, %91 in 1 : vector<8x8xf32>, vector<8x8xf32>, vector<8x8xf32>, vector<8x8xf32> -> vector<8x32xf32>
    %93 = tpu.concatenate %87, %92 in 0 : vector<8x32xf32>, vector<8x32xf32> -> vector<16x32xf32>
    %c0_30 = arith.constant 0 : index
    %c0_31 = arith.constant 0 : index
    %94 = vector.load %arg4[%c0_30, %c0_31] : memref<32x32xf32, #tpu.memory_space<vmem>>, vector<32x32xf32>
    %cst_32 = arith.constant dense<0.000000e+00> : vector<16x32xf32>
    %95 = tpu.matmul %93, %94, %cst_32 {dimension_numbers = #tpu.dot_dimension_numbers<[1], [0], [0], [1], [0, 0, 1, 1], [], []>} : vector<16x32xf32>, vector<32x32xf32>, vector<16x32xf32> -> vector<16x32xf32>
    %96 = vector.broadcast %6 : vector<1x32xf32> to vector<16x32xf32>
    %97 = arith.addf %95, %96 : vector<16x32xf32>
    %98 = arith.addf %0, %97 : vector<16x32xf32>
    %cst_33 = arith.constant dense<0.000000e+00> : vector<16xf32>
    %99 = vector.multi_reduction <add>, %98, %cst_33 [1] : vector<16x32xf32> to vector<16xf32>
    %100 = vector.shape_cast %99 : vector<16xf32> to vector<16x1xf32>
    %cst_34 = arith.constant 3.200000e+01 : f32
    %101 = vector.broadcast %cst_34 : f32 to vector<16x1xf32>
    %102 = arith.divf %100, %101 : vector<16x1xf32>
    %103 = vector.broadcast %102 : vector<16x1xf32> to vector<16x32xf32>
    %104 = arith.subf %98, %103 : vector<16x32xf32>
    %105 = arith.mulf %104, %104 : vector<16x32xf32>
    %cst_35 = arith.constant dense<0.000000e+00> : vector<16xf32>
    %106 = vector.multi_reduction <add>, %105, %cst_35 [1] : vector<16x32xf32> to vector<16xf32>
    %107 = vector.shape_cast %106 : vector<16xf32> to vector<16x1xf32>
    %cst_36 = arith.constant 3.200000e+01 : f32
    %108 = vector.broadcast %cst_36 : f32 to vector<16x1xf32>
    %109 = arith.divf %107, %108 : vector<16x1xf32>
    %110 = vector.broadcast %102 : vector<16x1xf32> to vector<16x32xf32>
    %111 = arith.subf %98, %110 : vector<16x32xf32>
    %cst_37 = arith.constant 9.99999974E-6 : f32
    %112 = vector.broadcast %cst_37 : f32 to vector<16x1xf32>
    %113 = arith.addf %109, %112 : vector<16x1xf32>
    %114 = math.rsqrt %113 : vector<16x1xf32>
    %115 = vector.broadcast %114 : vector<16x1xf32> to vector<16x32xf32>
    %116 = arith.mulf %111, %115 : vector<16x32xf32>
    %117 = vector.broadcast %4 : vector<1x32xf32> to vector<16x32xf32>
    %118 = arith.mulf %116, %117 : vector<16x32xf32>
    %119 = vector.broadcast %5 : vector<1x32xf32> to vector<16x32xf32>
    %120 = arith.addf %118, %119 : vector<16x32xf32>
    %c0_38 = arith.constant 0 : index
    %c0_39 = arith.constant 0 : index
    %121 = vector.load %arg5[%c0_38, %c0_39] : memref<32x128xf32, #tpu.memory_space<vmem>>, vector<32x128xf32>
    %cst_40 = arith.constant dense<0.000000e+00> : vector<16x128xf32>
    %122 = tpu.matmul %120, %121, %cst_40 {dimension_numbers = #tpu.dot_dimension_numbers<[1], [0], [0], [1], [0, 0, 1, 1], [], []>} : vector<16x32xf32>, vector<32x128xf32>, vector<16x128xf32> -> vector<16x128xf32>
    %123 = vector.broadcast %8 : vector<1x128xf32> to vector<16x128xf32>
    %124 = arith.addf %122, %123 : vector<16x128xf32>
    %cst_41 = arith.constant 5.000000e-01 : f32
    %125 = vector.broadcast %cst_41 : f32 to vector<16x128xf32>
    %126 = arith.mulf %125, %124 : vector<16x128xf32>
    %cst_42 = arith.constant 0.707106769 : f32
    %127 = vector.broadcast %cst_42 : f32 to vector<16x128xf32>
    %128 = arith.mulf %124, %127 : vector<16x128xf32>
    %cst_43 = arith.constant 0.000000e+00 : f32
    %129 = vector.broadcast %cst_43 : f32 to vector<16x128xf32>
    %130 = arith.cmpf oge, %128, %129 : vector<16x128xf32>
    %cst_44 = arith.constant 0.000000e+00 : f32
    %131 = vector.broadcast %cst_44 : f32 to vector<16x128xf32>
    %132 = arith.subf %131, %128 : vector<16x128xf32>
    %133 = arith.select %130, %128, %132 : vector<16x128xi1>, vector<16x128xf32>
    %cst_45 = arith.constant 0.327591091 : f32
    %134 = vector.broadcast %cst_45 : f32 to vector<16x128xf32>
    %135 = arith.mulf %134, %133 : vector<16x128xf32>
    %cst_46 = arith.constant 1.000000e+00 : f32
    %136 = vector.broadcast %cst_46 : f32 to vector<16x128xf32>
    %137 = arith.addf %136, %135 : vector<16x128xf32>
    %cst_47 = arith.constant 1.000000e+00 : f32
    %138 = vector.broadcast %cst_47 : f32 to vector<16x128xf32>
    %139 = arith.divf %138, %137 : vector<16x128xf32>
    %cst_48 = arith.constant 1.06140542 : f32
    %140 = vector.broadcast %cst_48 : f32 to vector<16x128xf32>
    %141 = arith.mulf %139, %140 : vector<16x128xf32>
    %cst_49 = arith.constant -1.45315206 : f32
    %142 = vector.broadcast %cst_49 : f32 to vector<16x128xf32>
    %143 = arith.addf %142, %141 : vector<16x128xf32>
    %144 = arith.mulf %139, %143 : vector<16x128xf32>
    %cst_50 = arith.constant 1.42141378 : f32
    %145 = vector.broadcast %cst_50 : f32 to vector<16x128xf32>
    %146 = arith.addf %145, %144 : vector<16x128xf32>
    %147 = arith.mulf %139, %146 : vector<16x128xf32>
    %cst_51 = arith.constant -0.284496725 : f32
    %148 = vector.broadcast %cst_51 : f32 to vector<16x128xf32>
    %149 = arith.addf %148, %147 : vector<16x128xf32>
    %150 = arith.mulf %139, %149 : vector<16x128xf32>
    %cst_52 = arith.constant 0.254829586 : f32
    %151 = vector.broadcast %cst_52 : f32 to vector<16x128xf32>
    %152 = arith.addf %151, %150 : vector<16x128xf32>
    %153 = arith.mulf %139, %152 : vector<16x128xf32>
    %cst_53 = arith.constant 0.000000e+00 : f32
    %154 = vector.broadcast %cst_53 : f32 to vector<16x128xf32>
    %155 = arith.subf %154, %133 : vector<16x128xf32>
    %156 = arith.mulf %155, %133 : vector<16x128xf32>
    %157 = math.exp %156 : vector<16x128xf32>
    %158 = arith.mulf %153, %157 : vector<16x128xf32>
    %cst_54 = arith.constant 1.000000e+00 : f32
    %159 = vector.broadcast %cst_54 : f32 to vector<16x128xf32>
    %160 = arith.subf %159, %158 : vector<16x128xf32>
    %cst_55 = arith.constant 0.000000e+00 : f32
    %161 = vector.broadcast %cst_55 : f32 to vector<16x128xf32>
    %162 = arith.cmpf oge, %128, %161 : vector<16x128xf32>
    %cst_56 = arith.constant 0.000000e+00 : f32
    %163 = vector.broadcast %cst_56 : f32 to vector<16x128xf32>
    %164 = arith.subf %163, %160 : vector<16x128xf32>
    %165 = arith.select %162, %160, %164 : vector<16x128xi1>, vector<16x128xf32>
    %cst_57 = arith.constant 1.000000e+00 : f32
    %166 = vector.broadcast %cst_57 : f32 to vector<16x128xf32>
    %167 = arith.addf %166, %165 : vector<16x128xf32>
    %168 = arith.mulf %126, %167 : vector<16x128xf32>
    %c0_58 = arith.constant 0 : index
    %c0_59 = arith.constant 0 : index
    %169 = vector.load %arg6[%c0_58, %c0_59] : memref<128x32xf32, #tpu.memory_space<vmem>>, vector<128x32xf32>
    %cst_60 = arith.constant dense<0.000000e+00> : vector<16x32xf32>
    %170 = tpu.matmul %168, %169, %cst_60 {dimension_numbers = #tpu.dot_dimension_numbers<[1], [0], [0], [1], [0, 0, 1, 1], [], []>} : vector<16x128xf32>, vector<128x32xf32>, vector<16x32xf32> -> vector<16x32xf32>
    %171 = vector.broadcast %7 : vector<1x32xf32> to vector<16x32xf32>
    %172 = arith.addf %170, %171 : vector<16x32xf32>
    %173 = arith.addf %98, %172 : vector<16x32xf32>
    %c0_61 = arith.constant 0 : index
    %c0_62 = arith.constant 0 : index
    %174 = vector.load %arg8[%c0_61, %c0_62] : memref<16x32xf32, #tpu.memory_space<vmem>>, vector<16x32xf32>
    tpu.vector_store %arg8[%c0_61, %c0_62], %173 {strides = array<i32>} : memref<16x32xf32, #tpu.memory_space<vmem>>, vector<16x32xf32>,
    %c0_63 = arith.constant 0 : index
    %c0_64 = arith.constant 0 : index
    %175 = vector.load %arg9[%c0_63, %c0_64] : memref<64x64xf32, #tpu.memory_space<vmem>>, vector<64x64xf32>
    tpu.vector_store %arg9[%c0_63, %c0_64], %81 {strides = array<i32>} : memref<64x64xf32, #tpu.memory_space<vmem>>, vector<64x64xf32>,
    return
  }
  func.func @transform_0(%arg0: i32) -> (i32, i32) {
    %c0_i32 = arith.constant 0 : i32
    %c0_i32_0 = arith.constant 0 : i32
    %c0_i32_1 = arith.constant 0 : i32
    return %c0_i32, %c0_i32_0 : i32, i32
  }
  func.func @transform_1(%arg0: i32) -> (i32, i32) {
    %c0_i32 = arith.constant 0 : i32
    %c0_i32_0 = arith.constant 0 : i32
    %c0_i32_1 = arith.constant 0 : i32
    return %c0_i32, %c0_i32_0 : i32, i32
  }
  func.func @transform_2(%arg0: i32) -> (i32, i32) {
    %c0_i32 = arith.constant 0 : i32
    %c0_i32_0 = arith.constant 0 : i32
    %c0_i32_1 = arith.constant 0 : i32
    return %c0_i32, %c0_i32_0 : i32, i32
  }
  func.func @transform_3(%arg0: i32) -> (i32, i32) {
    %c0_i32 = arith.constant 0 : i32
    %c0_i32_0 = arith.constant 0 : i32
    %c0_i32_1 = arith.constant 0 : i32
    return %c0_i32, %c0_i32_0 : i32, i32
  }
  func.func @transform_4(%arg0: i32) -> (i32, i32) {
    %c0_i32 = arith.constant 0 : i32
    %c0_i32_0 = arith.constant 0 : i32
    %c0_i32_1 = arith.constant 0 : i32
    return %c0_i32, %c0_i32_0 : i32, i32
  }
  func.func @transform_5(%arg0: i32) -> (i32, i32) {
    %c0_i32 = arith.constant 0 : i32
    %c0_i32_0 = arith.constant 0 : i32
    %c0_i32_1 = arith.constant 0 : i32
    return %c0_i32, %c0_i32_0 : i32, i32
  }
  func.func @transform_6(%arg0: i32) -> (i32, i32) {
    %c0_i32 = arith.constant 0 : i32
    %c0_i32_0 = arith.constant 0 : i32
    %c0_i32_1 = arith.constant 0 : i32
    return %c0_i32, %c0_i32_0 : i32, i32
  }
  func.func @transform_7(%arg0: i32) -> (i32, i32) {
    %c0_i32 = arith.constant 0 : i32
    %c0_i32_0 = arith.constant 0 : i32
    %c0_i32_1 = arith.constant 0 : i32
    return %c0_i32, %c0_i32_0 : i32, i32
  }
  func.func @transform_8(%arg0: i32) -> (i32, i32) {
    %c0_i32 = arith.constant 0 : i32
    %c0_i32_0 = arith.constant 0 : i32
    %c0_i32_1 = arith.constant 0 : i32
    return %c0_i32, %c0_i32_0 : i32, i32
  }
}

</mosaic_0001>

<llo_original>
// kernel: tpu_custom_call.1
$region0: #{tpu_custom_call.1}
  #allocation0 [shape = 'u32[]', space=smem, size = 0x4, offset = 0x4, fixed_abs, tag = 'smem constant byte address 0x4 - core index']
  #allocation1 [shape = 'u32[144,128]{1,0:T(1,128)}', space=vmem, size = 0x12000, scoped, tag = 'internal scratch']
  %s0 = inlined_call_operand.vmem [shape: f32[16,32], index: 0, kind: input, shape index: {}]
  %s1 = inlined_call_operand.vmem [shape: f32[128,24], index: 1, kind: input, shape index: {}]
  %s2 = inlined_call_operand.vmem [shape: f32[64,24], index: 2, kind: input, shape index: {}]
  %s3 = inlined_call_operand.vmem [shape: f32[32,32], index: 3, kind: input, shape index: {}]
  %s4 = inlined_call_operand.vmem [shape: f32[32,128], index: 4, kind: input, shape index: {}]
  %s5 = inlined_call_operand.vmem [shape: f32[128,32], index: 5, kind: input, shape index: {}]
  %s6 = inlined_call_operand.vmem [shape: f32[8,128], index: 6, kind: input, shape index: {}]
  %s7 = inlined_call_operand.hbm [shape: f32[16,32], index: 7, kind: output, shape index: {0}]
  %s8 = inlined_call_operand.hbm [shape: f32[64,64], index: 8, kind: output, shape index: {1}]
  %9 = xla_tuple %s7, %s8
  %s10 = sld [smem:[#allocation0]]
  $region46: #{tpu_custom_call.1} parent=0
    _
  %s12 = ssub.s32 1, %s10
  %s13 = scalar_select 0, %s12, %s10
  $region1: #{tpu_custom_call.1} parent=0
    #allocation2 [shape = 'u8[8192]{0}', space=vmem, size = 0x2000, scoped, tag = 'output window, operand 0, single buffered']
    #allocation3 [shape = 's32[1]{0}', space=sflag, size = 0x4, scoped, tag = 'scoped memory for tpu_custom_call.1']
    #allocation4 [shape = 'u8[32768]{0}', space=vmem, size = 0x8000, scoped, tag = 'output window, operand 1, single buffered']
    #allocation5 [shape = 's32[1]{0}', space=sflag, size = 0x4, scoped, tag = 'scoped memory for tpu_custom_call.1']
    %14 = vsyncpa [#allocation3], 0
    %15 = vsyncpa [#allocation5], 0
    // Predicated region
    $region2: #{tpu_custom_call.1} parent=1 // pred_check
      _
    $region3: #{tpu_custom_call.1} parent=1 // pred_check_branch
      %17 = sbr.rel (0) target = $region5
    $region4: #{tpu_custom_call.1} parent=1 // pred_region
      _
    $region5: #{tpu_custom_call.1} parent=1 // pred_fallthru
      _
    // Predicated region
    $region6: #{tpu_custom_call.1} parent=1 // pred_check
      _
    $region7: #{tpu_custom_call.1} parent=1 // pred_check_branch
      %19 = sbr.rel (0) target = $region9
    $region8: #{tpu_custom_call.1} parent=1 // pred_region
      _
    $region9: #{tpu_custom_call.1} parent=1 // pred_fallthru
      _
    // Predicated region
    $region10: #{tpu_custom_call.1} parent=1 // pred_check
      _
    $region11: #{tpu_custom_call.1} parent=1 // pred_check_branch
      %21 = sbr.rel (0) target = $region13
    $region12: #{tpu_custom_call.1} parent=1 // pred_region
      _
    $region13: #{tpu_custom_call.1} parent=1 // pred_fallthru
      _
    // Predicated region
    $region14: #{tpu_custom_call.1} parent=1 // pred_check
      _
    $region15: #{tpu_custom_call.1} parent=1 // pred_check_branch
      %23 = sbr.rel (0) target = $region17
    $region16: #{tpu_custom_call.1} parent=1 // pred_region
      _
    $region17: #{tpu_custom_call.1} parent=1 // pred_fallthru
      _
    // Predicated region
    $region18: #{tpu_custom_call.1} parent=1 // pred_check
      _
    $region19: #{tpu_custom_call.1} parent=1 // pred_check_branch
      %25 = sbr.rel (0) target = $region21
    $region20: #{tpu_custom_call.1} parent=1 // pred_region
      _
    $region21: #{tpu_custom_call.1} parent=1 // pred_fallthru
      _
    // Predicated region
    $region22: #{tpu_custom_call.1} parent=1 // pred_check
      _
    $region23: #{tpu_custom_call.1} parent=1 // pred_check_branch
      %27 = sbr.rel (0) target = $region25
    $region24: #{tpu_custom_call.1} parent=1 // pred_region
      _
    $region25: #{tpu_custom_call.1} parent=1 // pred_fallthru
      _
    // Predicated region
    $region26: #{tpu_custom_call.1} parent=1 // pred_check
      _
    $region27: #{tpu_custom_call.1} parent=1 // pred_check_branch
      %29 = sbr.rel (0) target = $region29
    $region28: #{tpu_custom_call.1} parent=1 // pred_region
      _
    $region29: #{tpu_custom_call.1} parent=1 // pred_fallthru
      _
    %v30 = vld [vmem:[%s0] sm:$0xff]
    %v31 = vld [vmem:[%s0 + $0x8] sm:$0xff]
    %v32 = vld [vmem:[%s6] sm:$0xff]
    %vm33 = vcmask 261120
    %v34 = vsel %vm33, %v30, 0.0
    %35 = vadd.xlane.f32.xlu0 %v34
    %v36 = vpop.xlane.xlu0 %35
    %v37 = vsel %vm33, %v31, 0.0
    %38 = vadd.xlane.f32.xlu0 %v37
    %v39 = vpop.xlane.xlu0 %38
    %v40 = vrcp.pop 32.0
    %v41 = vmul.f32 %v36, %v40
    %v42 = vmul.f32 %v39, %v40
    %v43 = vsub.f32 %v30, %v41
    %v44 = vsub.f32 %v31, %v42
    %v45 = vmul.f32 %v43, %v43
    %v46 = vmul.f32 %v44, %v44
    %v47 = vsel %vm33, %v45, 0.0
    %48 = vadd.xlane.f32.xlu0 %v47
    %v49 = vpop.xlane.xlu0 %48
    %v50 = vsel %vm33, %v46, 0.0
    %51 = vadd.xlane.f32.xlu0 %v50
    %v52 = vpop.xlane.xlu0 %51
    %v53 = vmul.f32 %v49, %v40
    %v54 = vmul.f32 %v52, %v40
    %v55 = vadd.f32 %v53, 1e-05
    %v56 = vadd.f32 %v54, 1e-05
    %v57 = vrsqrt.pop %v55
    %v58 = vrsqrt.pop %v56
    %v59 = vmul.f32 %v43, %v57
    %v60 = vmul.f32 %v44, %v58
    %v61 = vlaneseq
    %v62 = vshrl.u32 %v61, 7
    %v63 = vsub.s32 0, %v62
    %v64 = vrot.slane %v32, %v63
    %v65 = vmul.f32 %v59, %v64
    %v66 = vmul.f32 %v60, %v64
    %v67 = vlaneseq
    %v68 = vshrl.u32 %v67, 7
    %v69 = vsub.s32 1, %v68
    %v70 = vrot.slane %v32, %v69
    %v71 = vadd.f32 %v65, %v70
    %v72 = vadd.f32 %v66, %v70
    %v73 = vsel %vm33, %v71, 0.0
    %75 = vrot.lane.b32.xlu0 %v71, 32
    %v76 = vpop.permute.xlu0 %75
    %v78 = vsel %vm33, 0.0, %v76
    %vm79 = vcmask 523264
    %v80 = vsel %vm79, %v78, 0.0
    %81 = vrot.lane.b32.xlu0 %v71, 64
    %v82 = vpop.permute.xlu0 %81
    %v84 = vsel %vm79, 0.0, %v82
    %vm85 = vcmask 785408
    %v86 = vsel %vm85, %v84, 0.0
    %87 = vrot.lane.b32.xlu0 %v71, 96
    %v88 = vpop.permute.xlu0 %87
    %v90 = vsel %vm85, 0.0, %v88
    %v91 = vsel %vm33, %v72, 0.0
    %93 = vrot.lane.b32.xlu0 %v72, 32
    %v94 = vpop.permute.xlu0 %93
    %v96 = vsel %vm33, 0.0, %v94
    %v97 = vsel %vm79, %v96, 0.0
    %98 = vrot.lane.b32.xlu0 %v72, 64
    %v99 = vpop.permute.xlu0 %98
    %v101 = vsel %vm79, 0.0, %v99
    %v102 = vsel %vm85, %v101, 0.0
    %103 = vrot.lane.b32.xlu0 %v72, 96
    %v104 = vpop.permute.xlu0 %103
    %v106 = vsel %vm85, 0.0, %v104
    %v107 = vld [vmem:[%s1] sm:$0xff]
    %v108 = vld [vmem:[%s1 + $0x8] sm:$0xff]
    %v109 = vld [vmem:[%s1 + $0x10] sm:$0xff]
    %v110 = vld [vmem:[%s1 + $0x18] sm:$0xff]
    %v111 = vld [vmem:[%s1 + $0x20] sm:$0xff]
    %v112 = vld [vmem:[%s1 + $0x28] sm:$0xff]
    %v113 = vld [vmem:[%s1 + $0x30] sm:$0xff]
    %v114 = vld [vmem:[%s1 + $0x38] sm:$0xff]
    %v115 = vld [vmem:[%s1 + $0x40] sm:$0xff]
    %v116 = vld [vmem:[%s1 + $0x48] sm:$0xff]
    %v117 = vld [vmem:[%s1 + $0x50] sm:$0xff]
    %v118 = vld [vmem:[%s1 + $0x58] sm:$0xff]
    %v119 = vld [vmem:[%s1 + $0x60] sm:$0xff]
    %v120 = vld [vmem:[%s1 + $0x68] sm:$0xff]
    %v121 = vld [vmem:[%s1 + $0x70] sm:$0xff]
    %v122 = vld [vmem:[%s1 + $0x78] sm:$0xff]
    %v123 = vld [vmem:[%s2] sm:$0xff]
    %v124 = vld [vmem:[%s2 + $0x8] sm:$0xff]
    %v125 = vld [vmem:[%s2 + $0x10] sm:$0xff]
    %v126 = vld [vmem:[%s2 + $0x18] sm:$0xff]
    %v127 = vld [vmem:[%s2 + $0x20] sm:$0xff]
    %v128 = vld [vmem:[%s2 + $0x28] sm:$0xff]
    %v129 = vld [vmem:[%s2 + $0x30] sm:$0xff]
    %v130 = vld [vmem:[%s2 + $0x38] sm:$0xff]
    %131 = vmatprep.subr.mxu0 0.0
    %132 = vmatpush1.msra.mxu0 %v107
    %133 = vmatprep.subr.mxu0 0.0
    %134 = vmatpush1.msra.mxu0 %v108
    %135 = vmatprep.subr.mxu0 0.0
    %136 = vmatpush1.msra.mxu0 %v109
    %137 = vmatprep.subr.mxu0 0.0
    %138 = vmatpush1.msra.mxu0 %v110
    %139 = vmatprep.subr.mxu0 0.0
    %140 = vmatpush1.msra.mxu0 %v111
    %141 = vmatprep.subr.mxu0 0.0
    %142 = vmatpush1.msra.mxu0 %v112
    %143 = vmatprep.subr.mxu0 0.0
    %144 = vmatpush1.msra.mxu0 %v113
    %145 = vmatprep.subr.mxu0 0.0
    %146 = vmatpush1.msra.mxu0 %v114
    %147 = vmatprep.subr.mxu0 0.0
    %148 = vmatpush1.msra.mxu0 %v115
    %149 = vmatprep.subr.mxu0 0.0
    %150 = vmatpush1.msra.mxu0 %v116
    %151 = vmatprep.subr.mxu0 0.0
    %152 = vmatpush1.msra.mxu0 %v117
    %153 = vmatprep.subr.mxu0 0.0
    %154 = vmatpush1.msra.mxu0 %v118
    %155 = vmatprep.subr.mxu0 0.0
    %156 = vmatpush1.msra.mxu0 %v119
    %157 = vmatprep.subr.mxu0 0.0
    %158 = vmatpush1.msra.mxu0 %v120
    %159 = vmatprep.subr.mxu0 0.0
    %160 = vmatpush1.msra.mxu0 %v121
    %161 = vmatprep.subr.mxu0 0.0
    %162 = vmatpush1.msra.mxu0 %v122
    %163 = vmatprep.subr.mxu0 0.0
    %164 = vmatpush1.msra.mxu0 0.0
    %165 = vmatprep.subr.mxu0 0.0
    %166 = vmatpush1.msra.mxu0 0.0
    %167 = vmatprep.subr.mxu0 0.0
    %168 = vmatpush1.msra.mxu0 0.0
    %169 = vmatprep.subr.mxu0 0.0
    %170 = vmatpush1.msra.mxu0 0.0
    %171 = vmatprep.subr.mxu0 0.0
    %172 = vmatpush1.msra.mxu0 0.0
    %173 = vmatprep.subr.mxu0 0.0
    %174 = vmatpush1.msra.mxu0 0.0
    %175 = vmatprep.subr.mxu0 0.0
    %176 = vmatpush1.msra.mxu0 0.0
    %177 = vmatprep.subr.mxu0 0.0
    %178 = vmatpush1.msra.mxu0 0.0
    %179 = vmatprep.subr.mxu0 0.0
    %180 = vmatpush1.msra.mxu0 0.0
    %181 = vmatprep.subr.mxu0 0.0
    %182 = vmatpush1.msra.mxu0 0.0
    %183 = vmatprep.subr.mxu0 0.0
    %184 = vmatpush1.msra.mxu0 0.0
    %185 = vmatprep.subr.mxu0 0.0
    %186 = vmatpush1.msra.mxu0 0.0
    %187 = vmatprep.subr.mxu0 0.0
    %188 = vmatpush1.msra.mxu0 0.0
    %189 = vmatprep.subr.mxu0 0.0
    %190 = vmatpush1.msra.mxu0 0.0
    %191 = vmatprep.subr.mxu0 0.0
    %192 = vmatpush1.msra.mxu0 0.0
    %193 = vmatprep.subr.mxu0 0.0
    %194 = vmatpush1.msra.mxu0 0.0
    %195 = vmatprep.mubr.f32.mxu0 0.0
    %196 = vmatmul.mubr.f32.gmra.mrb[0].mxu0 %v73
    %v197 = vpop.f32.mrb[0].mxu0
    %v198 = vadd.f32 %v123, %v197
    %v199 = vpop.f32.mrb[0].mxu0
    %200 = vmatprep.mubr.f32.mxu0 0.0
    %201 = vmatmul.mubr.f32.gmra.mrb[0].mxu0 %v80
    %v202 = vpop.f32.mrb[0].mxu0
    %v203 = vadd.f32 %v124, %v202
    %v204 = vpop.f32.mrb[0].mxu0
    %205 = vmatprep.mubr.f32.mxu0 0.0
    %206 = vmatmul.mubr.f32.gmra.mrb[0].mxu0 %v86
    %v207 = vpop.f32.mrb[0].mxu0
    %v208 = vadd.f32 %v125, %v207
    %v209 = vpop.f32.mrb[0].mxu0
    %210 = vmatprep.mubr.f32.mxu0 0.0
    %211 = vmatmul.mubr.f32.gmra.mrb[0].mxu0 %v90
    %v212 = vpop.f32.mrb[0].mxu0
    %v213 = vadd.f32 %v126, %v212
    %v214 = vpop.f32.mrb[0].mxu0
    %215 = vmatprep.mubr.f32.mxu0 0.0
    %216 = vmatmul.mubr.f32.gmra.mrb[0].mxu0 %v91
    %v217 = vpop.f32.mrb[0].mxu0
    %v218 = vadd.f32 %v127, %v217
    %v219 = vpop.f32.mrb[0].mxu0
    %220 = vmatprep.mubr.f32.mxu0 0.0
    %221 = vmatmul.mubr.f32.gmra.mrb[0].mxu0 %v97
    %v222 = vpop.f32.mrb[0].mxu0
    %v223 = vadd.f32 %v128, %v222
    %v224 = vpop.f32.mrb[0].mxu0
    %225 = vmatprep.mubr.f32.mxu0 0.0
    %226 = vmatmul.mubr.f32.gmra.mrb[0].mxu0 %v102
    %v227 = vpop.f32.mrb[0].mxu0
    %v228 = vadd.f32 %v129, %v227
    %v229 = vpop.f32.mrb[0].mxu0
    %230 = vmatprep.mubr.f32.mxu0 0.0
    %231 = vmatmul.mubr.f32.gmra.mrb[0].mxu0 %v106
    %v232 = vpop.f32.mrb[0].mxu0
    %v233 = vadd.f32 %v130, %v232
    %v234 = vpop.f32.mrb[0].mxu0
    %235 = vdwg.mxu0
    %v236 = vlaneseq
    %v237 = vshrl.u32 %v236, 7
    %v238 = vadd.s32 %v237, 8
    %v239 = vadd.s32 %v237, 16
    %v240 = vadd.s32 %v237, 24
    %v241 = vadd.s32 %v237, 32
    %v242 = vadd.s32 %v237, 40
    %v243 = vadd.s32 %v237, 48
    %v244 = vadd.s32 %v237, 56
    %v245 = vlaneseq
    %v246 = vand.u32 %v245, 127
    %v247 = vshra.s32 %v237, 3
    %v248 = vshra.s32 %v238, 3
    %v249 = vshra.s32 %v239, 3
    %v250 = vshra.s32 %v240, 3
    %v251 = vshra.s32 %v241, 3
    %v252 = vshra.s32 %v242, 3
    %v253 = vshra.s32 %v243, 3
    %v254 = vshra.s32 %v244, 3
    %v255 = vshra.s32 %v246, 3
    %vm256 = vcmp.eq.s32.totalorder %v247, %v255
    %vm257 = vcmp.eq.s32.totalorder %v248, %v255
    %vm258 = vcmp.eq.s32.totalorder %v249, %v255
    %vm259 = vcmp.eq.s32.totalorder %v250, %v255
    %vm260 = vcmp.eq.s32.totalorder %v251, %v255
    %vm261 = vcmp.eq.s32.totalorder %v252, %v255
    %vm262 = vcmp.eq.s32.totalorder %v253, %v255
    %vm263 = vcmp.eq.s32.totalorder %v254, %v255
    %vm264 = vcmp.ge.s32.totalorder %v237, %v246
    %vm265 = vcmp.ge.s32.totalorder %v238, %v246
    %vm266 = vcmp.ge.s32.totalorder %v239, %v246
    %vm267 = vcmp.ge.s32.totalorder %v240, %v246
    %vm268 = vcmp.ge.s32.totalorder %v241, %v246
    %vm269 = vcmp.ge.s32.totalorder %v242, %v246
    %vm270 = vcmp.ge.s32.totalorder %v243, %v246
    %vm271 = vcmp.ge.s32.totalorder %v244, %v246
    %vm272 = vmand %vm256, %vm264
    %vm273 = vmand %vm257, %vm265
    %vm274 = vmand %vm258, %vm266
    %vm275 = vmand %vm259, %vm267
    %vm276 = vmand %vm260, %vm268
    %vm277 = vmand %vm261, %vm269
    %vm278 = vmand %vm262, %vm270
    %vm279 = vmand %vm263, %vm271
    %288 = vrot.lane.b32.xlu0 %v198, 120
    %v289 = vpop.permute.xlu0 %288
    %290 = vrot.lane.b32.xlu0 %v203, 120
    %v291 = vpop.permute.xlu0 %290
    %292 = vrot.lane.b32.xlu0 %v208, 120
    %v293 = vpop.permute.xlu0 %292
    %294 = vrot.lane.b32.xlu0 %v213, 120
    %v295 = vpop.permute.xlu0 %294
    %296 = vrot.lane.b32.xlu0 %v218, 120
    %v297 = vpop.permute.xlu0 %296
    %298 = vrot.lane.b32.xlu0 %v223, 120
    %v299 = vpop.permute.xlu0 %298
    %300 = vrot.lane.b32.xlu0 %v228, 120
    %v301 = vpop.permute.xlu0 %300
    %302 = vrot.lane.b32.xlu0 %v233, 120
    %v303 = vpop.permute.xlu0 %302
    %vm304 = vcmask 64512
    %v305 = vsel %vm304, %v198, 0
    %v307 = vsel %vm304, %v203, 0
    %v309 = vsel %vm304, %v208, 0
    %v311 = vsel %vm304, %v213, 0
    %v313 = vsel %vm304, %v218, 0
    %v315 = vsel %vm304, %v223, 0
    %v317 = vsel %vm304, %v228, 0
    %v319 = vsel %vm304, %v233, 0
    %v321 = vsel %vm304, %v289, 0
    %v323 = vsel %vm304, %v291, 0
    %v325 = vsel %vm304, %v293, 0
    %v327 = vsel %vm304, %v295, 0
    %v329 = vsel %vm304, %v297, 0
    %v331 = vsel %vm304, %v299, 0
    %v333 = vsel %vm304, %v301, 0
    %v335 = vsel %vm304, %v303, 0
    %337 = vmatprep.subr.mxu0 0.0
    %338 = vmatpush1.xpose.msra.mxu0 %v321
    %339 = vmatprep.subr.mxu0 0.0
    %340 = vmatpush1.xpose.msra.mxu0 %v323
    %341 = vmatprep.subr.mxu0 0.0
    %342 = vmatpush1.xpose.msra.mxu0 %v325
    %343 = vmatprep.subr.mxu0 0.0
    %344 = vmatpush1.xpose.msra.mxu0 %v327
    %345 = vmatprep.subr.mxu0 0.0
    %346 = vmatpush1.xpose.msra.mxu0 %v329
    %347 = vmatprep.subr.mxu0 0.0
    %348 = vmatpush1.xpose.msra.mxu0 %v331
    %349 = vmatprep.subr.mxu0 0.0
    %350 = vmatpush1.xpose.msra.mxu0 %v333
    %351 = vmatprep.subr.mxu0 0.0
    %352 = vmatpush1.xpose.msra.mxu0 %v335
    %353 = vmatprep.subr.mxu0 0.0
    %354 = vmatpush1.xpose.msra.mxu0 0.0
    %355 = vmatprep.subr.mxu0 0.0
    %356 = vmatpush1.xpose.msra.mxu0 0.0
    %357 = vmatprep.subr.mxu0 0.0
    %358 = vmatpush1.xpose.msra.mxu0 0.0
    %359 = vmatprep.subr.mxu0 0.0
    %360 = vmatpush1.xpose.msra.mxu0 0.0
    %361 = vmatprep.subr.mxu0 0.0
    %362 = vmatpush1.xpose.msra.mxu0 0.0
    %363 = vmatprep.subr.mxu0 0.0
    %364 = vmatpush1.xpose.msra.mxu0 0.0
    %365 = vmatprep.subr.mxu0 0.0
    %366 = vmatpush1.xpose.msra.mxu0 0.0
    %367 = vmatprep.subr.mxu0 0.0
    %368 = vmatpush1.xpose.msra.mxu0 0.0
    %369 = vmatprep.subr.mxu0 0.0
    %370 = vmatpush1.xpose.msra.mxu0 0.0
    %371 = vmatprep.subr.mxu0 0.0
    %372 = vmatpush1.xpose.msra.mxu0 0.0
    %373 = vmatprep.subr.mxu0 0.0
    %374 = vmatpush1.xpose.msra.mxu0 0.0
    %375 = vmatprep.subr.mxu0 0.0
    %376 = vmatpush1.xpose.msra.mxu0 0.0
    %377 = vmatprep.subr.mxu0 0.0
    %378 = vmatpush1.xpose.msra.mxu0 0.0
    %379 = vmatprep.subr.mxu0 0.0
    %380 = vmatpush1.xpose.msra.mxu0 0.0
    %381 = vmatprep.subr.mxu0 0.0
    %382 = vmatpush1.xpose.msra.mxu0 0.0
    %383 = vmatprep.subr.mxu0 0.0
    %384 = vmatpush1.xpose.msra.mxu0 0.0
    %385 = vmatprep.subr.mxu0 0.0
    %386 = vmatpush1.xpose.msra.mxu0 0.0
    %387 = vmatprep.subr.mxu0 0.0
    %388 = vmatpush1.xpose.msra.mxu0 0.0
    %389 = vmatprep.subr.mxu0 0.0
    %390 = vmatpush1.xpose.msra.mxu0 0.0
    %391 = vmatprep.subr.mxu0 0.0
    %392 = vmatpush1.xpose.msra.mxu0 0.0
    %393 = vmatprep.subr.mxu0 0.0
    %394 = vmatpush1.xpose.msra.mxu0 0.0
    %395 = vmatprep.subr.mxu0 0.0
    %396 = vmatpush1.xpose.msra.mxu0 0.0
    %397 = vmatprep.subr.mxu0 0.0
    %398 = vmatpush1.xpose.msra.mxu0 0.0
    %399 = vmatprep.subr.mxu0 0.0
    %400 = vmatpush1.xpose.msra.mxu0 0.0
    %401 = vmatprep.mubr.f32.mxu0 0.0
    %402 = vmatmul.mubr.f32.gmra.mrb[0].mxu0 %v305
    %v403 = vpop.f32.mrb[0].mxu0
    %v404 = vadd.f32 0.0, %v403
    %v405 = vpop.f32.mrb[0].mxu0
    %406 = vmatprep.mubr.f32.mxu0 0.0
    %407 = vmatmul.mubr.f32.gmra.mrb[0].mxu0 %v307
    %v408 = vpop.f32.mrb[0].mxu0
    %v409 = vadd.f32 0.0, %v408
    %v410 = vpop.f32.mrb[0].mxu0
    %411 = vmatprep.mubr.f32.mxu0 0.0
    %412 = vmatmul.mubr.f32.gmra.mrb[0].mxu0 %v309
    %v413 = vpop.f32.mrb[0].mxu0
    %v414 = vadd.f32 0.0, %v413
    %v415 = vpop.f32.mrb[0].mxu0
    %416 = vmatprep.mubr.f32.mxu0 0.0
    %417 = vmatmul.mubr.f32.gmra.mrb[0].mxu0 %v311
    %v418 = vpop.f32.mrb[0].mxu0
    %v419 = vadd.f32 0.0, %v418
    %v420 = vpop.f32.mrb[0].mxu0
    %421 = vmatprep.mubr.f32.mxu0 0.0
    %422 = vmatmul.mubr.f32.gmra.mrb[0].mxu0 %v313
    %v423 = vpop.f32.mrb[0].mxu0
    %v424 = vadd.f32 0.0, %v423
    %v425 = vpop.f32.mrb[0].mxu0
    %426 = vmatprep.mubr.f32.mxu0 0.0
    %427 = vmatmul.mubr.f32.gmra.mrb[0].mxu0 %v315
    %v428 = vpop.f32.mrb[0].mxu0
    %v429 = vadd.f32 0.0, %v428
    %v430 = vpop.f32.mrb[0].mxu0
    %431 = vmatprep.mubr.f32.mxu0 0.0
    %432 = vmatmul.mubr.f32.gmra.mrb[0].mxu0 %v317
    %v433 = vpop.f32.mrb[0].mxu0
    %v434 = vadd.f32 0.0, %v433
    %v435 = vpop.f32.mrb[0].mxu0
    %436 = vmatprep.mubr.f32.mxu0 0.0
    %437 = vmatmul.mubr.f32.gmra.mrb[0].mxu0 %v319
    %v438 = vpop.f32.mrb[0].mxu0
    %v439 = vadd.f32 0.0, %v438
    %v440 = vpop.f32.mrb[0].mxu0
    %441 = vdwg.mxu0
    %v442 = vsel %vm272, %v404, -10000.0
    %v443 = vsel %vm273, %v409, -10000.0
    %v444 = vsel %vm274, %v414, -10000.0
    %v445 = vsel %vm275, %v419, -10000.0
    %v446 = vsel %vm276, %v424, -10000.0
    %v447 = vsel %vm277, %v429, -10000.0
    %v448 = vsel %vm278, %v434, -10000.0
    %v449 = vsel %vm279, %v439, -10000.0
    %v450 = vsel %vm79, %v442, -inf
    %451 = vmax.xlane.f32.xlu0 %v450
    %v452 = vpop.xlane.xlu0 %451
    %v453 = vsel %vm79, %v443, -inf
    %454 = vmax.xlane.f32.xlu0 %v453
    %v455 = vpop.xlane.xlu0 %454
    %v456 = vsel %vm79, %v444, -inf
    %457 = vmax.xlane.f32.xlu0 %v456
    %v458 = vpop.xlane.xlu0 %457
    %v459 = vsel %vm79, %v445, -inf
    %460 = vmax.xlane.f32.xlu0 %v459
    %v461 = vpop.xlane.xlu0 %460
    %v462 = vsel %vm79, %v446, -inf
    %463 = vmax.xlane.f32.xlu0 %v462
    %v464 = vpop.xlane.xlu0 %463
    %v465 = vsel %vm79, %v447, -inf
    %466 = vmax.xlane.f32.xlu0 %v465
    %v467 = vpop.xlane.xlu0 %466
    %v468 = vsel %vm79, %v448, -inf
    %469 = vmax.xlane.f32.xlu0 %v468
    %v470 = vpop.xlane.xlu0 %469
    %v471 = vsel %vm79, %v449, -inf
    %472 = vmax.xlane.f32.xlu0 %v471
    %v473 = vpop.xlane.xlu0 %472
    %v474 = vsub.f32 %v442, %v452
    %v475 = vsub.f32 %v443, %v455
    %v476 = vsub.f32 %v444, %v458
    %v477 = vsub.f32 %v445, %v461
    %v478 = vsub.f32 %v446, %v464
    %v479 = vsub.f32 %v447, %v467
    %v480 = vsub.f32 %v448, %v470
    %v481 = vsub.f32 %v449, %v473
    %v482 = vmul.f32 %v474, 1.442695
    %v483 = vpow.pop %v482
    %v484 = vmul.f32 %v475, 1.442695
    %v485 = vpow.pop %v484
    %v486 = vmul.f32 %v476, 1.442695
    %v487 = vpow.pop %v486
    %v488 = vmul.f32 %v477, 1.442695
    %v489 = vpow.pop %v488
    %v490 = vmul.f32 %v478, 1.442695
    %v491 = vpow.pop %v490
    %v492 = vmul.f32 %v479, 1.442695
    %v493 = vpow.pop %v492
    %v494 = vmul.f32 %v480, 1.442695
    %v495 = vpow.pop %v494
    %v496 = vmul.f32 %v481, 1.442695
    %v497 = vpow.pop %v496
    %v498 = vsel %vm79, %v483, 0.0
    %499 = vadd.xlane.f32.xlu0 %v498
    %v500 = vpop.xlane.xlu0 %499
    %v501 = vsel %vm79, %v485, 0.0
    %502 = vadd.xlane.f32.xlu0 %v501
    %v503 = vpop.xlane.xlu0 %502
    %v504 = vsel %vm79, %v487, 0.0
    %505 = vadd.xlane.f32.xlu0 %v504
    %v506 = vpop.xlane.xlu0 %505
    %v507 = vsel %vm79, %v489, 0.0
    %508 = vadd.xlane.f32.xlu0 %v507
    %v509 = vpop.xlane.xlu0 %508
    %v510 = vsel %vm79, %v491, 0.0
    %511 = vadd.xlane.f32.xlu0 %v510
    %v512 = vpop.xlane.xlu0 %511
    %v513 = vsel %vm79, %v493, 0.0
    %514 = vadd.xlane.f32.xlu0 %v513
    %v515 = vpop.xlane.xlu0 %514
    %v516 = vsel %vm79, %v495, 0.0
    %517 = vadd.xlane.f32.xlu0 %v516
    %v518 = vpop.xlane.xlu0 %517
    %v519 = vsel %vm79, %v497, 0.0
    %520 = vadd.xlane.f32.xlu0 %v519
    %v521 = vpop.xlane.xlu0 %520
    %v522 = vrcp.pop %v500
    %v523 = vmul.f32 %v483, %v522
    %v524 = vrcp.pop %v503
    %v525 = vmul.f32 %v485, %v524
    %v526 = vrcp.pop %v506
    %v527 = vmul.f32 %v487, %v526
    %v528 = vrcp.pop %v509
    %v529 = vmul.f32 %v489, %v528
    %v530 = vrcp.pop %v512
    %v531 = vmul.f32 %v491, %v530
    %v532 = vrcp.pop %v515
    %v533 = vmul.f32 %v493, %v532
    %v534 = vrcp.pop %v518
    %v535 = vmul.f32 %v495, %v534
    %v536 = vrcp.pop %v521
    %v537 = vmul.f32 %v497, %v536
    %538 = vrot.lane.b32.xlu0 %v198, 112
    %v539 = vpop.permute.xlu0 %538
    %540 = vrot.lane.b32.xlu0 %v203, 112
    %v541 = vpop.permute.xlu0 %540
    %542 = vrot.lane.b32.xlu0 %v208, 112
    %v543 = vpop.permute.xlu0 %542
    %544 = vrot.lane.b32.xlu0 %v213, 112
    %v545 = vpop.permute.xlu0 %544
    %546 = vrot.lane.b32.xlu0 %v218, 112
    %v547 = vpop.permute.xlu0 %546
    %548 = vrot.lane.b32.xlu0 %v223, 112
    %v549 = vpop.permute.xlu0 %548
    %550 = vrot.lane.b32.xlu0 %v228, 112
    %v551 = vpop.permute.xlu0 %550
    %552 = vrot.lane.b32.xlu0 %v233, 112
    %v553 = vpop.permute.xlu0 %552
    %v563 = vsel %vm79, %v523, 0
    %v566 = vsel %vm79, %v525, 0
    %v569 = vsel %vm79, %v527, 0
    %v572 = vsel %vm79, %v529, 0
    %v575 = vsel %vm79, %v531, 0
    %v578 = vsel %vm79, %v533, 0
    %v581 = vsel %vm79, %v535, 0
    %v584 = vsel %vm79, %v537, 0
    %586 = vmatprep.subr.mxu0 0.0
    %587 = vmatpush1.msra.mxu0 %v539
    %588 = vmatprep.subr.mxu0 0.0
    %589 = vmatpush1.msra.mxu0 %v541
    %590 = vmatprep.subr.mxu0 0.0
    %591 = vmatpush1.msra.mxu0 %v543
    %592 = vmatprep.subr.mxu0 0.0
    %593 = vmatpush1.msra.mxu0 %v545
    %594 = vmatprep.subr.mxu0 0.0
    %595 = vmatpush1.msra.mxu0 %v547
    %596 = vmatprep.subr.mxu0 0.0
    %597 = vmatpush1.msra.mxu0 %v549
    %598 = vmatprep.subr.mxu0 0.0
    %599 = vmatpush1.msra.mxu0 %v551
    %600 = vmatprep.subr.mxu0 0.0
    %601 = vmatpush1.msra.mxu0 %v553
    %602 = vmatprep.subr.mxu0 0.0
    %603 = vmatpush1.msra.mxu0 0.0
    %604 = vmatprep.subr.mxu0 0.0
    %605 = vmatpush1.msra.mxu0 0.0
    %606 = vmatprep.subr.mxu0 0.0
    %607 = vmatpush1.msra.mxu0 0.0
    %608 = vmatprep.subr.mxu0 0.0
    %609 = vmatpush1.msra.mxu0 0.0
    %610 = vmatprep.subr.mxu0 0.0
    %611 = vmatpush1.msra.mxu0 0.0
    %612 = vmatprep.subr.mxu0 0.0
    %613 = vmatpush1.msra.mxu0 0.0
    %614 = vmatprep.subr.mxu0 0.0
    %615 = vmatpush1.msra.mxu0 0.0
    %616 = vmatprep.subr.mxu0 0.0
    %617 = vmatpush1.msra.mxu0 0.0
    %618 = vmatprep.subr.mxu0 0.0
    %619 = vmatpush1.msra.mxu0 0.0
    %620 = vmatprep.subr.mxu0 0.0
    %621 = vmatpush1.msra.mxu0 0.0
    %622 = vmatprep.subr.mxu0 0.0
    %623 = vmatpush1.msra.mxu0 0.0
    %624 = vmatprep.subr.mxu0 0.0
    %625 = vmatpush1.msra.mxu0 0.0
    %626 = vmatprep.subr.mxu0 0.0
    %627 = vmatpush1.msra.mxu0 0.0
    %628 = vmatprep.subr.mxu0 0.0
    %629 = vmatpush1.msra.mxu0 0.0
    %630 = vmatprep.subr.mxu0 0.0
    %631 = vmatpush1.msra.mxu0 0.0
    %632 = vmatprep.subr.mxu0 0.0
    %633 = vmatpush1.msra.mxu0 0.0
    %634 = vmatprep.subr.mxu0 0.0
    %635 = vmatpush1.msra.mxu0 0.0
    %636 = vmatprep.subr.mxu0 0.0
    %637 = vmatpush1.msra.mxu0 0.0
    %638 = vmatprep.subr.mxu0 0.0
    %639 = vmatpush1.msra.mxu0 0.0
    %640 = vmatprep.subr.mxu0 0.0
    %641 = vmatpush1.msra.mxu0 0.0
    %642 = vmatprep.subr.mxu0 0.0
    %643 = vmatpush1.msra.mxu0 0.0
    %644 = vmatprep.subr.mxu0 0.0
    %645 = vmatpush1.msra.mxu0 0.0
    %646 = vmatprep.subr.mxu0 0.0
    %647 = vmatpush1.msra.mxu0 0.0
    %648 = vmatprep.subr.mxu0 0.0
    %649 = vmatpush1.msra.mxu0 0.0
    %650 = vmatprep.mubr.f32.mxu0 0.0
    %651 = vmatmul.mubr.f32.gmra.mrb[0].mxu0 %v563
    %v652 = vpop.f32.mrb[0].mxu0
    %v653 = vadd.f32 0.0, %v652
    %v654 = vpop.f32.mrb[0].mxu0
    %655 = vmatprep.mubr.f32.mxu0 0.0
    %656 = vmatmul.mubr.f32.gmra.mrb[0].mxu0 %v566
    %v657 = vpop.f32.mrb[0].mxu0
    %v658 = vadd.f32 0.0, %v657
    %v659 = vpop.f32.mrb[0].mxu0
    %660 = vmatprep.mubr.f32.mxu0 0.0
    %661 = vmatmul.mubr.f32.gmra.mrb[0].mxu0 %v569
    %v662 = vpop.f32.mrb[0].mxu0
    %v663 = vadd.f32 0.0, %v662
    %v664 = vpop.f32.mrb[0].mxu0
    %665 = vmatprep.mubr.f32.mxu0 0.0
    %666 = vmatmul.mubr.f32.gmra.mrb[0].mxu0 %v572
    %v667 = vpop.f32.mrb[0].mxu0
    %v668 = vadd.f32 0.0, %v667
    %v669 = vpop.f32.mrb[0].mxu0
    %670 = vmatprep.mubr.f32.mxu0 0.0
    %671 = vmatmul.mubr.f32.gmra.mrb[0].mxu0 %v575
    %v672 = vpop.f32.mrb[0].mxu0
    %v673 = vadd.f32 0.0, %v672
    %v674 = vpop.f32.mrb[0].mxu0
    %675 = vmatprep.mubr.f32.mxu0 0.0
    %676 = vmatmul.mubr.f32.gmra.mrb[0].mxu0 %v578
    %v677 = vpop.f32.mrb[0].mxu0
    %v678 = vadd.f32 0.0, %v677
    %v679 = vpop.f32.mrb[0].mxu0
    %680 = vmatprep.mubr.f32.mxu0 0.0
    %681 = vmatmul.mubr.f32.gmra.mrb[0].mxu0 %v581
    %v682 = vpop.f32.mrb[0].mxu0
    %v683 = vadd.f32 0.0, %v682
    %v684 = vpop.f32.mrb[0].mxu0
    %685 = vmatprep.mubr.f32.mxu0 0.0
    %686 = vmatmul.mubr.f32.gmra.mrb[0].mxu0 %v584
    %v687 = vpop.f32.mrb[0].mxu0
    %v688 = vadd.f32 0.0, %v687
    %v689 = vpop.f32.mrb[0].mxu0
    %690 = vdwg.mxu0
    %692 = vrot.lane.b32.xlu0 %v658, 8
    %v693 = vpop.permute.xlu0 %692
    %696 = vrot.lane.b32.xlu0 %v663, 16
    %v697 = vpop.permute.xlu0 %696
    %700 = vrot.lane.b32.xlu0 %v668, 24
    %v701 = vpop.permute.xlu0 %700
    %v703 = vsel %vm304, %v653, %v693
    %vm704 = vcmask 130048
    %v705 = vsel %vm704, %v703, %v697
    %vm706 = vcmask 195584
    %v707 = vsel %vm706, %v705, %v701
    %709 = vrot.lane.b32.xlu0 %v678, 8
    %v710 = vpop.permute.xlu0 %709
    %713 = vrot.lane.b32.xlu0 %v683, 16
    %v714 = vpop.permute.xlu0 %713
    %717 = vrot.lane.b32.xlu0 %v688, 24
    %v718 = vpop.permute.xlu0 %717
    %v720 = vsel %vm304, %v673, %v710
    %v721 = vsel %vm704, %v720, %v714
    %v722 = vsel %vm706, %v721, %v718
    %v723 = vld [vmem:[%s3] sm:$0xff]
    %v724 = vld [vmem:[%s3 + $0x8] sm:$0xff]
    %v725 = vld [vmem:[%s3 + $0x10] sm:$0xff]
    %v726 = vld [vmem:[%s3 + $0x18] sm:$0xff]
    %v727 = vlaneseq
    %v728 = vshrl.u32 %v727, 7
    %v729 = vsub.s32 4, %v728
    %v730 = vrot.slane %v32, %v729
    %v732 = vsel %vm33, %v707, 0
    %v735 = vsel %vm33, %v722, 0
    %737 = vmatprep.subr.mxu0 0.0
    %738 = vmatpush1.msra.mxu0 %v723
    %739 = vmatprep.subr.mxu0 0.0
    %740 = vmatpush1.msra.mxu0 %v724
    %741 = vmatprep.subr.mxu0 0.0
    %742 = vmatpush1.msra.mxu0 %v725
    %743 = vmatprep.subr.mxu0 0.0
    %744 = vmatpush1.msra.mxu0 %v726
    %745 = vmatprep.subr.mxu0 0.0
    %746 = vmatpush1.msra.mxu0 0.0
    %747 = vmatprep.subr.mxu0 0.0
    %748 = vmatpush1.msra.mxu0 0.0
    %749 = vmatprep.subr.mxu0 0.0
    %750 = vmatpush1.msra.mxu0 0.0
    %751 = vmatprep.subr.mxu0 0.0
    %752 = vmatpush1.msra.mxu0 0.0
    %753 = vmatprep.subr.mxu0 0.0
    %754 = vmatpush1.msra.mxu0 0.0
    %755 = vmatprep.subr.mxu0 0.0
    %756 = vmatpush1.msra.mxu0 0.0
    %757 = vmatprep.subr.mxu0 0.0
    %758 = vmatpush1.msra.mxu0 0.0
    %759 = vmatprep.subr.mxu0 0.0
    %760 = vmatpush1.msra.mxu0 0.0
    %761 = vmatprep.subr.mxu0 0.0
    %762 = vmatpush1.msra.mxu0 0.0
    %763 = vmatprep.subr.mxu0 0.0
    %764 = vmatpush1.msra.mxu0 0.0
    %765 = vmatprep.subr.mxu0 0.0
    %766 = vmatpush1.msra.mxu0 0.0
    %767 = vmatprep.subr.mxu0 0.0
    %768 = vmatpush1.msra.mxu0 0.0
    %769 = vmatprep.subr.mxu0 0.0
    %770 = vmatpush1.msra.mxu0 0.0
    %771 = vmatprep.subr.mxu0 0.0
    %772 = vmatpush1.msra.mxu0 0.0
    %773 = vmatprep.subr.mxu0 0.0
    %774 = vmatpush1.msra.mxu0 0.0
    %775 = vmatprep.subr.mxu0 0.0
    %776 = vmatpush1.msra.mxu0 0.0
    %777 = vmatprep.subr.mxu0 0.0
    %778 = vmatpush1.msra.mxu0 0.0
    %779 = vmatprep.subr.mxu0 0.0
    %780 = vmatpush1.msra.mxu0 0.0
    %781 = vmatprep.subr.mxu0 0.0
    %782 = vmatpush1.msra.mxu0 0.0
    %783 = vmatprep.subr.mxu0 0.0
    %784 = vmatpush1.msra.mxu0 0.0
    %785 = vmatprep.subr.mxu0 0.0
    %786 = vmatpush1.msra.mxu0 0.0
    %787 = vmatprep.subr.mxu0 0.0
    %788 = vmatpush1.msra.mxu0 0.0
    %789 = vmatprep.subr.mxu0 0.0
    %790 = vmatpush1.msra.mxu0 0.0
    %791 = vmatprep.subr.mxu0 0.0
    %792 = vmatpush1.msra.mxu0 0.0
    %793 = vmatprep.subr.mxu0 0.0
    %794 = vmatpush1.msra.mxu0 0.0
    %795 = vmatprep.subr.mxu0 0.0
    %796 = vmatpush1.msra.mxu0 0.0
    %797 = vmatprep.subr.mxu0 0.0
    %798 = vmatpush1.msra.mxu0 0.0
    %799 = vmatprep.subr.mxu0 0.0
    %800 = vmatpush1.msra.mxu0 0.0
    %801 = vmatprep.mubr.f32.mxu0 0.0
    %802 = vmatmul.mubr.f32.gmra.mrb[0].mxu0 %v732
    %v803 = vpop.f32.mrb[0].mxu0
    %v804 = vadd.f32 %v730, %v803
    %v805 = vpop.f32.mrb[0].mxu0
    %806 = vmatprep.mubr.f32.mxu0 0.0
    %807 = vmatmul.mubr.f32.gmra.mrb[0].mxu0 %v735
    %v808 = vpop.f32.mrb[0].mxu0
    %v809 = vadd.f32 %v730, %v808
    %v810 = vpop.f32.mrb[0].mxu0
    %811 = vdwg.mxu0
    %v812 = vadd.f32 %v30, %v804
    %v813 = vadd.f32 %v31, %v809
    %v814 = vsel %vm33, %v812, 0.0
    %815 = vadd.xlane.f32.xlu0 %v814
    %v816 = vpop.xlane.xlu0 %815
    %v817 = vsel %vm33, %v813, 0.0
    %818 = vadd.xlane.f32.xlu0 %v817
    %v819 = vpop.xlane.xlu0 %818
    %v820 = vmul.f32 %v816, %v40
    %v821 = vmul.f32 %v819, %v40
    %v822 = vsub.f32 %v812, %v820
    %v823 = vsub.f32 %v813, %v821
    %v824 = vmul.f32 %v822, %v822
    %v825 = vmul.f32 %v823, %v823
    %v826 = vsel %vm33, %v824, 0.0
    %827 = vadd.xlane.f32.xlu0 %v826
    %v828 = vpop.xlane.xlu0 %827
    %v829 = vsel %vm33, %v825, 0.0
    %830 = vadd.xlane.f32.xlu0 %v829
    %v831 = vpop.xlane.xlu0 %830
    %v832 = vmul.f32 %v828, %v40
    %v833 = vmul.f32 %v831, %v40
    %v834 = vadd.f32 %v832, 1e-05
    %v835 = vadd.f32 %v833, 1e-05
    %v836 = vrsqrt.pop %v834
    %v837 = vrsqrt.pop %v835
    %v838 = vmul.f32 %v822, %v836
    %v839 = vmul.f32 %v823, %v837
    %v840 = vlaneseq
    %v841 = vshrl.u32 %v840, 7
    %v842 = vsub.s32 2, %v841
    %v843 = vrot.slane %v32, %v842
    %v844 = vmul.f32 %v838, %v843
    %v845 = vmul.f32 %v839, %v843
    %v846 = vlaneseq
    %v847 = vshrl.u32 %v846, 7
    %v848 = vsub.s32 3, %v847
    %v849 = vrot.slane %v32, %v848
    %v850 = vadd.f32 %v844, %v849
    %v851 = vadd.f32 %v845, %v849
    %v852 = vld [vmem:[%s4] sm:$0xff]
    %v853 = vld [vmem:[%s4 + $0x8] sm:$0xff]
    %v854 = vld [vmem:[%s4 + $0x10] sm:$0xff]
    %v855 = vld [vmem:[%s4 + $0x18] sm:$0xff]
    %v856 = vlaneseq
    %v857 = vshrl.u32 %v856, 7
    %v858 = vsub.s32 6, %v857
    %v859 = vrot.slane %v32, %v858
    %v861 = vsel %vm33, %v850, 0
    %v864 = vsel %vm33, %v851, 0
    %866 = vmatprep.subr.mxu0 0.0
    %867 = vmatpush1.msra.mxu0 %v852
    %868 = vmatprep.subr.mxu0 0.0
    %869 = vmatpush1.msra.mxu0 %v853
    %870 = vmatprep.subr.mxu0 0.0
    %871 = vmatpush1.msra.mxu0 %v854
    %872 = vmatprep.subr.mxu0 0.0
    %873 = vmatpush1.msra.mxu0 %v855
    %874 = vmatprep.subr.mxu0 0.0
    %875 = vmatpush1.msra.mxu0 0.0
    %876 = vmatprep.subr.mxu0 0.0
    %877 = vmatpush1.msra.mxu0 0.0
    %878 = vmatprep.subr.mxu0 0.0
    %879 = vmatpush1.msra.mxu0 0.0
    %880 = vmatprep.subr.mxu0 0.0
    %881 = vmatpush1.msra.mxu0 0.0
    %882 = vmatprep.subr.mxu0 0.0
    %883 = vmatpush1.msra.mxu0 0.0
    %884 = vmatprep.subr.mxu0 0.0
    %885 = vmatpush1.msra.mxu0 0.0
    %886 = vmatprep.subr.mxu0 0.0
    %887 = vmatpush1.msra.mxu0 0.0
    %888 = vmatprep.subr.mxu0 0.0
    %889 = vmatpush1.msra.mxu0 0.0
    %890 = vmatprep.subr.mxu0 0.0
    %891 = vmatpush1.msra.mxu0 0.0
    %892 = vmatprep.subr.mxu0 0.0
    %893 = vmatpush1.msra.mxu0 0.0
    %894 = vmatprep.subr.mxu0 0.0
    %895 = vmatpush1.msra.mxu0 0.0
    %896 = vmatprep.subr.mxu0 0.0
    %897 = vmatpush1.msra.mxu0 0.0
    %898 = vmatprep.subr.mxu0 0.0
    %899 = vmatpush1.msra.mxu0 0.0
    %900 = vmatprep.subr.mxu0 0.0
    %901 = vmatpush1.msra.mxu0 0.0
    %902 = vmatprep.subr.mxu0 0.0
    %903 = vmatpush1.msra.mxu0 0.0
    %904 = vmatprep.subr.mxu0 0.0
    %905 = vmatpush1.msra.mxu0 0.0
    %906 = vmatprep.subr.mxu0 0.0
    %907 = vmatpush1.msra.mxu0 0.0
    %908 = vmatprep.subr.mxu0 0.0
    %909 = vmatpush1.msra.mxu0 0.0
    %910 = vmatprep.subr.mxu0 0.0
    %911 = vmatpush1.msra.mxu0 0.0
    %912 = vmatprep.subr.mxu0 0.0
    %913 = vmatpush1.msra.mxu0 0.0
    %914 = vmatprep.subr.mxu0 0.0
    %915 = vmatpush1.msra.mxu0 0.0
    %916 = vmatprep.subr.mxu0 0.0
    %917 = vmatpush1.msra.mxu0 0.0
    %918 = vmatprep.subr.mxu0 0.0
    %919 = vmatpush1.msra.mxu0 0.0
    %920 = vmatprep.subr.mxu0 0.0
    %921 = vmatpush1.msra.mxu0 0.0
    %922 = vmatprep.subr.mxu0 0.0
    %923 = vmatpush1.msra.mxu0 0.0
    %924 = vmatprep.subr.mxu0 0.0
    %925 = vmatpush1.msra.mxu0 0.0
    %926 = vmatprep.subr.mxu0 0.0
    %927 = vmatpush1.msra.mxu0 0.0
    %928 = vmatprep.subr.mxu0 0.0
    %929 = vmatpush1.msra.mxu0 0.0
    %930 = vmatprep.mubr.f32.mxu0 0.0
    %931 = vmatmul.mubr.f32.gmra.mrb[0].mxu0 %v861
    %v932 = vpop.f32.mrb[0].mxu0
    %v933 = vadd.f32 %v859, %v932
    %v934 = vpop.f32.mrb[0].mxu0
    %935 = vmatprep.mubr.f32.mxu0 0.0
    %936 = vmatmul.mubr.f32.gmra.mrb[0].mxu0 %v864
    %v937 = vpop.f32.mrb[0].mxu0
    %v938 = vadd.f32 %v859, %v937
    %v939 = vpop.f32.mrb[0].mxu0
    %940 = vdwg.mxu0
    %v941 = vmul.f32 %v933, 0.5
    %v942 = vmul.f32 %v938, 0.5
    %v943 = vmul.f32 %v933, 0.70710677
    %v944 = vmul.f32 %v938, 0.70710677
    %vm945 = vcmp.ge.f32.partialorder %v943, 0.0
    %vm946 = vcmp.ge.f32.partialorder %v944, 0.0
    %v947 = vsub.f32 0.0, %v943
    %v948 = vsub.f32 0.0, %v944
    %v949 = vsel %vm945, %v943, %v947
    %v950 = vsel %vm946, %v944, %v948
    %v951 = vmul.f32 %v949, 0.3275911
    %v952 = vmul.f32 %v950, 0.3275911
    %v953 = vadd.f32 %v951, 1.0
    %v954 = vadd.f32 %v952, 1.0
    %v955 = vrcp.pop %v953
    %v956 = vmul.f32 1.0, %v955
    %v957 = vrcp.pop %v954
    %v958 = vmul.f32 1.0, %v957
    %v959 = vmul.f32 %v956, 1.0614054
    %v960 = vmul.f32 %v958, 1.0614054
    %v961 = vadd.f32 %v959, -1.4531521
    %v962 = vadd.f32 %v960, -1.4531521
    %v963 = vmul.f32 %v956, %v961
    %v964 = vmul.f32 %v958, %v962
    %v965 = vadd.f32 %v963, 1.4214138
    %v966 = vadd.f32 %v964, 1.4214138
    %v967 = vmul.f32 %v956, %v965
    %v968 = vmul.f32 %v958, %v966
    %v969 = vadd.f32 %v967, -0.28449672
    %v970 = vadd.f32 %v968, -0.28449672
    %v971 = vmul.f32 %v956, %v969
    %v972 = vmul.f32 %v958, %v970
    %v973 = vadd.f32 %v971, 0.2548296
    %v974 = vadd.f32 %v972, 0.2548296
    %v975 = vmul.f32 %v956, %v973
    %v976 = vmul.f32 %v958, %v974
    %v977 = vsub.f32 0.0, %v949
    %v978 = vsub.f32 0.0, %v950
    %v979 = vmul.f32 %v977, %v949
    %v980 = vmul.f32 %v978, %v950
    %v981 = vmul.f32 %v979, 1.442695
    %v982 = vpow.pop %v981
    %v983 = vmul.f32 %v980, 1.442695
    %v984 = vpow.pop %v983
    %v985 = vmul.f32 %v975, %v982
    %v986 = vmul.f32 %v976, %v984
    %v987 = vsub.f32 1.0, %v985
    %v988 = vsub.f32 1.0, %v986
    %v989 = vsub.f32 0.0, %v987
    %v990 = vsub.f32 0.0, %v988
    %v991 = vsel %vm945, %v987, %v989
    %v992 = vsel %vm946, %v988, %v990
    %v993 = vadd.f32 %v991, 1.0
    %v994 = vadd.f32 %v992, 1.0
    %v995 = vmul.f32 %v941, %v993
    %v996 = vmul.f32 %v942, %v994
    %v997 = vld [vmem:[%s5] sm:$0xff]
    %v998 = vld [vmem:[%s5 + $0x8] sm:$0xff]
    %v999 = vld [vmem:[%s5 + $0x10] sm:$0xff]
    %v1000 = vld [vmem:[%s5 + $0x18] sm:$0xff]
    %v1001 = vld [vmem:[%s5 + $0x20] sm:$0xff]
    %v1002 = vld [vmem:[%s5 + $0x28] sm:$0xff]
    %v1003 = vld [vmem:[%s5 + $0x30] sm:$0xff]
    %v1004 = vld [vmem:[%s5 + $0x38] sm:$0xff]
    %v1005 = vld [vmem:[%s5 + $0x40] sm:$0xff]
    %v1006 = vld [vmem:[%s5 + $0x48] sm:$0xff]
    %v1007 = vld [vmem:[%s5 + $0x50] sm:$0xff]
    %v1008 = vld [vmem:[%s5 + $0x58] sm:$0xff]
    %v1009 = vld [vmem:[%s5 + $0x60] sm:$0xff]
    %v1010 = vld [vmem:[%s5 + $0x68] sm:$0xff]
    %v1011 = vld [vmem:[%s5 + $0x70] sm:$0xff]
    %v1012 = vld [vmem:[%s5 + $0x78] sm:$0xff]
    %v1013 = vlaneseq
    %v1014 = vshrl.u32 %v1013, 7
    %v1015 = vsub.s32 5, %v1014
    %v1016 = vrot.slane %v32, %v1015
    %1017 = vmatprep.subr.mxu0 0.0
    %1018 = vmatpush1.msra.mxu0 %v997
    %1019 = vmatprep.subr.mxu0 0.0
    %1020 = vmatpush1.msra.mxu0 %v998
    %1021 = vmatprep.subr.mxu0 0.0
    %1022 = vmatpush1.msra.mxu0 %v999
    %1023 = vmatprep.subr.mxu0 0.0
    %1024 = vmatpush1.msra.mxu0 %v1000
    %1025 = vmatprep.subr.mxu0 0.0
    %1026 = vmatpush1.msra.mxu0 %v1001
    %1027 = vmatprep.subr.mxu0 0.0
    %1028 = vmatpush1.msra.mxu0 %v1002
    %1029 = vmatprep.subr.mxu0 0.0
    %1030 = vmatpush1.msra.mxu0 %v1003
    %1031 = vmatprep.subr.mxu0 0.0
    %1032 = vmatpush1.msra.mxu0 %v1004
    %1033 = vmatprep.subr.mxu0 0.0
    %1034 = vmatpush1.msra.mxu0 %v1005
    %1035 = vmatprep.subr.mxu0 0.0
    %1036 = vmatpush1.msra.mxu0 %v1006
    %1037 = vmatprep.subr.mxu0 0.0
    %1038 = vmatpush1.msra.mxu0 %v1007
    %1039 = vmatprep.subr.mxu0 0.0
    %1040 = vmatpush1.msra.mxu0 %v1008
    %1041 = vmatprep.subr.mxu0 0.0
    %1042 = vmatpush1.msra.mxu0 %v1009
    %1043 = vmatprep.subr.mxu0 0.0
    %1044 = vmatpush1.msra.mxu0 %v1010
    %1045 = vmatprep.subr.mxu0 0.0
    %1046 = vmatpush1.msra.mxu0 %v1011
    %1047 = vmatprep.subr.mxu0 0.0
    %1048 = vmatpush1.msra.mxu0 %v1012
    %1049 = vmatprep.subr.mxu0 0.0
    %1050 = vmatpush1.msra.mxu0 0.0
    %1051 = vmatprep.subr.mxu0 0.0
    %1052 = vmatpush1.msra.mxu0 0.0
    %1053 = vmatprep.subr.mxu0 0.0
    %1054 = vmatpush1.msra.mxu0 0.0
    %1055 = vmatprep.subr.mxu0 0.0
    %1056 = vmatpush1.msra.mxu0 0.0
    %1057 = vmatprep.subr.mxu0 0.0
    %1058 = vmatpush1.msra.mxu0 0.0
    %1059 = vmatprep.subr.mxu0 0.0
    %1060 = vmatpush1.msra.mxu0 0.0
    %1061 = vmatprep.subr.mxu0 0.0
    %1062 = vmatpush1.msra.mxu0 0.0
    %1063 = vmatprep.subr.mxu0 0.0
    %1064 = vmatpush1.msra.mxu0 0.0
    %1065 = vmatprep.subr.mxu0 0.0
    %1066 = vmatpush1.msra.mxu0 0.0
    %1067 = vmatprep.subr.mxu0 0.0
    %1068 = vmatpush1.msra.mxu0 0.0
    %1069 = vmatprep.subr.mxu0 0.0
    %1070 = vmatpush1.msra.mxu0 0.0
    %1071 = vmatprep.subr.mxu0 0.0
    %1072 = vmatpush1.msra.mxu0 0.0
    %1073 = vmatprep.subr.mxu0 0.0
    %1074 = vmatpush1.msra.mxu0 0.0
    %1075 = vmatprep.subr.mxu0 0.0
    %1076 = vmatpush1.msra.mxu0 0.0
    %1077 = vmatprep.subr.mxu0 0.0
    %1078 = vmatpush1.msra.mxu0 0.0
    %1079 = vmatprep.subr.mxu0 0.0
    %1080 = vmatpush1.msra.mxu0 0.0
    %1081 = vmatprep.mubr.f32.mxu0 0.0
    %1082 = vmatmul.mubr.f32.gmra.mrb[0].mxu0 %v995
    %v1083 = vpop.f32.mrb[0].mxu0
    %v1084 = vadd.f32 %v1016, %v1083
    %v1085 = vpop.f32.mrb[0].mxu0
    %1086 = vmatprep.mubr.f32.mxu0 0.0
    %1087 = vmatmul.mubr.f32.gmra.mrb[0].mxu0 %v996
    %v1088 = vpop.f32.mrb[0].mxu0
    %v1089 = vadd.f32 %v1016, %v1088
    %v1090 = vpop.f32.mrb[0].mxu0
    %1091 = vdwg.mxu0
    %v1092 = vadd.f32 %v812, %v1084
    %v1093 = vadd.f32 %v813, %v1089
    %1094 = vst.msk [vmem:[#allocation2] sm:$0xff] %vm33, %v1092
    %1095 = vst.msk [vmem:[#allocation2 + $0x8] sm:$0xff] %vm33, %v1093
    %1096 = vst.msk [vmem:[#allocation4] sm:$0xff] %vm79, %v523
    %1097 = vst.msk [vmem:[#allocation4 + $0x8] sm:$0xff] %vm79, %v525
    %1098 = vst.msk [vmem:[#allocation4 + $0x10] sm:$0xff] %vm79, %v527
    %1099 = vst.msk [vmem:[#allocation4 + $0x18] sm:$0xff] %vm79, %v529
    %1100 = vst.msk [vmem:[#allocation4 + $0x20] sm:$0xff] %vm79, %v531
    %1101 = vst.msk [vmem:[#allocation4 + $0x28] sm:$0xff] %vm79, %v533
    %1102 = vst.msk [vmem:[#allocation4 + $0x30] sm:$0xff] %vm79, %v535
    %1103 = vst.msk [vmem:[#allocation4 + $0x38] sm:$0xff] %vm79, %v537
    // Predicated region
    $region30: #{tpu_custom_call.1} parent=1 // pred_check
      _
    $region31: #{tpu_custom_call.1} parent=1 // pred_check_branch
      %1105 = sbr.rel (0) target = $region33
    $region32: #{tpu_custom_call.1} parent=1 // pred_region
      %s1107 = ssub.s32 256, 256
      %1108 = vsyncadd [#allocation3], %s1107
      %s1109 = sshll.u32 [#allocation2], 4
      %s1110 = int_to_ptr.vmem [resolvable:$true] %s1109
      %1115 = dma.vmem_to_hbm [thread:$0]  %s1110, 256, %s7, [#allocation3], 128, 128, 8
    $region33: #{tpu_custom_call.1} parent=1 // pred_fallthru
      _
    // Predicated region
    $region34: #{tpu_custom_call.1} parent=1 // pred_check
      _
    $region35: #{tpu_custom_call.1} parent=1 // pred_check_branch
      %1117 = sbr.rel (0) target = $region37
    $region36: #{tpu_custom_call.1} parent=1 // pred_region
      %s1119 = ssub.s32 1024, 1024
      %1120 = vsyncadd [#allocation5], %s1119
      %s1121 = sshll.u32 [#allocation4], 4
      %s1122 = int_to_ptr.vmem [resolvable:$true] %s1121
      %1127 = dma.vmem_to_hbm [thread:$0]  %s1122, 1024, %s8, [#allocation5], 128, 128, 8
    $region37: #{tpu_custom_call.1} parent=1 // pred_fallthru
      _
    // Predicated region
    $region38: #{tpu_custom_call.1} parent=1 // pred_check
      _
    $region39: #{tpu_custom_call.1} parent=1 // pred_check_branch
      %1129 = sbr.rel (0) target = $region41
    $region40: #{tpu_custom_call.1} parent=1 // pred_region
      %1130 = dma.done [#allocation3], 256
    $region41: #{tpu_custom_call.1} parent=1 // pred_fallthru
      _
    // Predicated region
    $region42: #{tpu_custom_call.1} parent=1 // pred_check
      _
    $region43: #{tpu_custom_call.1} parent=1 // pred_check_branch
      %1132 = sbr.rel (0) target = $region45
    $region44: #{tpu_custom_call.1} parent=1 // pred_region
      %1133 = dma.done [#allocation5], 1024
    $region45: #{tpu_custom_call.1} parent=1 // pred_fallthru
      _
    %1134 = vsyncpa [#allocation3], 1
    %1135 = vsyncpa [#allocation5], 1

</llo_original>
